<compile_context>
chip_gen: v7x
topology: tpu7x:2x2x1
jax: 0.10.0
libtpu: 0.0.40
codegen_flags: <defaults>
</compile_context>

<pallas_src>
import functools
import math

import jax
import jax.numpy as jnp
import numpy as np
from jax import lax
from jax.experimental import pallas as pl
from jax.experimental.pallas import tpu as pltpu


def _mha_kernel(q_ref, k_ref, v_ref,
                wq_ref, wk_ref, wv_ref, wo_ref,
                bqkv_ref, bo_ref,
                out_ref, *acc_scratch,
                heads_per_group, head_dim, scale,
                resident_weights, acc_in_out):
    g = pl.program_id(1)
    widx = g if resident_weights else 0

    xq = q_ref[0]            # (S, D) native dtype -- MXU widens, no VPU cast
    xk = k_ref[0]
    xv = v_ref[0]

    wq = wq_ref[widx]        # (D, GW)   GW = heads_per_group * head_dim
    wk = wk_ref[widx]
    wv = wv_ref[widx]
    wo = wo_ref[widx]        # (GW, D)
    bqkv = bqkv_ref[widx]    # (3, GW) packed q/k/v biases for this head group

    # Wide projections for every head in the group (f32 MXU accumulate).
    # 1/sqrt(hd) is folded into Q (S, GW): cheaper than scaling (S, S) scores.
    Qg = (jnp.dot(xq, wq, preferred_element_type=jnp.float32) + bqkv[0:1, :]) * scale
    Kg = jnp.dot(xk, wk, preferred_element_type=jnp.float32) + bqkv[1:2, :]
    Vg = jnp.dot(xv, wv, preferred_element_type=jnp.float32) + bqkv[2:3, :]

    # Per-head attention, statically unrolled over the (small) group.
    ctx_parts = []
    for hi in range(heads_per_group):
        lo = hi * head_dim
        Qh = Qg[:, lo:lo + head_dim]
        Kh = Kg[:, lo:lo + head_dim]
        Vh = Vg[:, lo:lo + head_dim]

        # scores = Qh @ Kh^T without materializing a transpose.
        scores = lax.dot_general(Qh, Kh, (((1,), (1,)), ((), ())),
                                 preferred_element_type=jnp.float32)    # (S, S)
        m = jnp.max(scores, axis=-1, keepdims=True)
        e = jnp.exp(scores - m)
        denom = jnp.sum(e, axis=-1, keepdims=True)
        attn = e * pl.reciprocal(denom, approx=True)                    # EUP slot
        ctx_parts.append(jnp.dot(attn, Vh, preferred_element_type=jnp.float32))

    # (S, GW) context -> single wide-contraction output projection per group.
    ctx = ctx_parts[0] if heads_per_group == 1 else jnp.concatenate(ctx_parts, axis=-1)
    partial = jnp.dot(ctx, wo, preferred_element_type=jnp.float32)      # (S, D)

    if acc_in_out:
        # f32 output: accumulate straight into the resident output block
        # (no scratch, no final copy -> one less vst stream per step).
        @pl.when(g == 0)
        def _():
            out_ref[0] = partial + bo_ref[...]

        @pl.when(g != 0)
        def _():
            out_ref[0] = out_ref[0] + partial
    else:
        acc_ref = acc_scratch[0]

        @pl.when(g == 0)
        def _():
            acc_ref[...] = partial + bo_ref[...]

        @pl.when(g != 0)
        def _():
            acc_ref[...] = acc_ref[...] + partial

        @pl.when(g == pl.num_programs(1) - 1)
        def _():
            out_ref[0] = acc_ref[...].astype(out_ref.dtype)


def multi_head_attention(q, k, v, params, num_heads, *,
                         max_group_width=256,
                         weight_residency_budget_bytes=12 * 1024 * 1024):
    B, S, D = q.shape
    assert D % num_heads == 0, "d_model must be divisible by num_heads"
    hd = D // num_heads
    wq, bq, wk, bk, wv, bv, wo, bo = params

    # Heads per group: largest divisor of num_heads whose lane width G*hd fits
    # one MXU pass (256 on v6e/v7x; still fine on v5e's 128-wide MXU).
    max_g = max(1, min(num_heads, max_group_width // max(hd, 1)))
    G = 1
    for cand in range(max_g, 0, -1):
        if num_heads % cand == 0:
            G = cand
            break
    num_groups = num_heads // G
    GW = G * hd

    # Wrapper-side (free) re-layout of the parameters into per-group tiles.
    wq_g = wq.reshape(D, num_groups, GW).transpose(1, 0, 2)    # (nG, D, GW)
    wk_g = wk.reshape(D, num_groups, GW).transpose(1, 0, 2)
    wv_g = wv.reshape(D, num_groups, GW).transpose(1, 0, 2)
    wo_g = wo.reshape(num_groups, GW, D)                        # (nG, GW, D)
    bqkv_g = jnp.stack([bq, bk, bv], axis=0).reshape(3, num_groups, GW).transpose(1, 0, 2)
    bo2 = bo.reshape(1, D)

    w_itemsize = jnp.dtype(wq.dtype).itemsize
    a_itemsize = jnp.dtype(q.dtype).itemsize
    weight_bytes = (4 * D * D + 4 * D) * w_itemsize

    # Residency: hold the full weight set in VMEM when small (no Bx re-stream on
    # v5e/v6e); stream per head-group otherwise (v7x's 64 MiB VMEM, big D).
    resident_weights = weight_bytes <= weight_residency_budget_bytes
    if resident_weights:
        w_in_spec = pl.BlockSpec((num_groups, D, GW), lambda b, g: (0, 0, 0))
        w_out_spec = pl.BlockSpec((num_groups, GW, D), lambda b, g: (0, 0, 0))
        bqkv_spec = pl.BlockSpec((num_groups, 3, GW), lambda b, g: (0, 0, 0))
        w_block_bytes = weight_bytes
    else:
        w_in_spec = pl.BlockSpec((1, D, GW), lambda b, g: (g, 0, 0))
        w_out_spec = pl.BlockSpec((1, GW, D), lambda b, g: (g, 0, 0))
        bqkv_spec = pl.BlockSpec((1, 3, GW), lambda b, g: (g, 0, 0))
        w_block_bytes = (3 * D * GW + GW * D + 3 * GW) * w_itemsize

    qkv_spec = pl.BlockSpec((1, S, D), lambda b, g: (b, 0, 0))   # resident across g
    bo_spec = pl.BlockSpec((1, D), lambda b, g: (0, 0))
    out_spec = pl.BlockSpec((1, S, D), lambda b, g: (b, 0, 0))

    acc_in_out = jnp.dtype(q.dtype) == jnp.dtype(jnp.float32)
    scratch_shapes = [] if acc_in_out else [pltpu.VMEM((S, D), jnp.float32)]

    # VMEM budget derived from actual block sizes (2x buffering) plus in-kernel
    # f32 intermediates and headroom; clamped to [16 MiB, 100 MiB].
    act_block_bytes = 2 * 4 * S * D * a_itemsize                 # q, k, v, out
    interm_bytes = (4 * S * GW + 2 * S * S + 2 * S * D) * 4      # Q/K/V/ctx, scores/e, partial
    scratch_bytes = 0 if acc_in_out else S * D * 4
    vmem_limit = (act_block_bytes + 2 * w_block_bytes + interm_bytes
                  + scratch_bytes + (4 << 20))
    vmem_limit = int(min(max(vmem_limit, 16 << 20), 100 << 20))

    cost = pl.CostEstimate(
        flops=int(B * (8 * S * D * D + 4 * num_heads * S * S * hd)),
        transcendentals=int(B * num_heads * S * S),
        bytes_accessed=int(4 * B * S * D * a_itemsize + weight_bytes),
    )

    kernel = functools.partial(
        _mha_kernel,
        heads_per_group=G, head_dim=hd, scale=1.0 / math.sqrt(hd),
        resident_weights=resident_weights, acc_in_out=acc_in_out)

    return pl.pallas_call(
        kernel,
        out_shape=jax.ShapeDtypeStruct((B, S, D), q.dtype),
        grid_spec=pltpu.PrefetchScalarGridSpec(
            num_scalar_prefetch=0,
            grid=(B, num_groups),
            in_specs=[qkv_spec, qkv_spec, qkv_spec,
                      w_in_spec, w_in_spec, w_in_spec, w_out_spec,
                      bqkv_spec, bo_spec],
            out_specs=out_spec,
            scratch_shapes=scratch_shapes,
        ),
        compiler_params=pltpu.CompilerParams(
            dimension_semantics=("parallel", "arbitrary"),
            vmem_limit_bytes=vmem_limit,
        ),
        cost_estimate=cost,
    )(q, k, v, wq_g, wk_g, wv_g, wo_g, bqkv_g, bo2)


def reference_mha(q, k, v, params, num_heads):
    """Pure-JAX reference mirroring the PyTorch forward."""
    B, S, D = q.shape
    hd = D // num_heads
    wq, bq, wk, bk, wv, bv, wo, bo = params
    Q = q @ wq + bq
    K = k @ wk + bk
    V = v @ wv + bv
    Q = Q.reshape(B, S, num_heads, hd).transpose(0, 2, 1, 3)
    K = K.reshape(B, S, num_heads, hd).transpose(0, 2, 1, 3)
    V = V.reshape(B, S, num_heads, hd).transpose(0, 2, 1, 3)
    scores = jnp.einsum("bhqd,bhkd->bhqk", Q, K) / math.sqrt(hd)
    attn = jax.nn.softmax(scores, axis=-1)
    out = jnp.einsum("bhqk,bhkd->bhqd", attn, V)
    out = out.transpose(0, 2, 1, 3).reshape(B, S, D)
    return out @ wo + bo


if __name__ == "__main__":
    B, S, D, H = 2, 8, 32, 4  # batch, seq_len, d_model, num_heads (smoke-test shapes)

    key = jax.random.PRNGKey(0)
    keys = jax.random.split(key, 11)

    scale = 1.0 / math.sqrt(D)
    wq = jax.random.uniform(keys[0], (D, D), jnp.float32, -scale, scale)
    bq = jax.random.uniform(keys[1], (D,), jnp.float32, -scale, scale)
    wk = jax.random.uniform(keys[2], (D, D), jnp.float32, -scale, scale)
    bk = jax.random.uniform(keys[3], (D,), jnp.float32, -scale, scale)
    wv = jax.random.uniform(keys[4], (D, D), jnp.float32, -scale, scale)
    bv = jax.random.uniform(keys[5], (D,), jnp.float32, -scale, scale)
    wo = jax.random.uniform(keys[6], (D, D), jnp.float32, -scale, scale)
    bo = jax.random.uniform(keys[7], (D,), jnp.float32, -scale, scale)
    params = (wq, bq, wk, bk, wv, bv, wo, bo)

    q = jax.random.normal(keys[8], (B, S, D), jnp.float32)
    k = jax.random.normal(keys[9], (B, S, D), jnp.float32)
    v = jax.random.normal(keys[10], (B, S, D), jnp.float32)

    out = multi_head_attention(q, k, v, params, H)
    out = jax.block_until_ready(out)

    ref = jax.block_until_ready(reference_mha(q, k, v, params, H))
    # approx reciprocal in the softmax perturbs results slightly -> 1e-3 tolerance
    np.testing.assert_allclose(np.asarray(out), np.asarray(ref), atol=1e-3, rtol=1e-3)

    print("KERNEL_OK")
</pallas_src>

<mosaic_0001>
module attributes {stable_mosaic.version = 11 : i64} {
  func.func @_mha_kernel(%arg0: i32, %arg1: i32, %arg2: memref<1x8x32xf32, #tpu.memory_space<vmem>>, %arg3: memref<1x8x32xf32, #tpu.memory_space<vmem>>, %arg4: memref<1x8x32xf32, #tpu.memory_space<vmem>>, %arg5: memref<1x32x32xf32, #tpu.memory_space<vmem>>, %arg6: memref<1x32x32xf32, #tpu.memory_space<vmem>>, %arg7: memref<1x32x32xf32, #tpu.memory_space<vmem>>, %arg8: memref<1x32x32xf32, #tpu.memory_space<vmem>>, %arg9: memref<1x3x32xf32, #tpu.memory_space<vmem>>, %arg10: memref<1x32xf32, #tpu.memory_space<vmem>>, %arg11: memref<1x8x32xf32, #tpu.memory_space<vmem>>) attributes {dimension_semantics = [#tpu.dimension_semantics<parallel>, #tpu.dimension_semantics<arbitrary>], iteration_bounds = array<i64: 2, 1>, scalar_prefetch = 0 : i64, scratch_operands = 0 : i64, tpu.core_type = #tpu.core_type<tc>, window_params = [{transform_indices = @transform_0, window_bounds = array<i64: 1, 8, 32>}, {transform_indices = @transform_1, window_bounds = array<i64: 1, 8, 32>}, {transform_indices = @transform_2, window_bounds = array<i64: 1, 8, 32>}, {pipeline_mode = #tpu.pipeline_mode<synchronous>, transform_indices = @transform_3, window_bounds = array<i64: 1, 32, 32>}, {pipeline_mode = #tpu.pipeline_mode<synchronous>, transform_indices = @transform_4, window_bounds = array<i64: 1, 32, 32>}, {pipeline_mode = #tpu.pipeline_mode<synchronous>, transform_indices = @transform_5, window_bounds = array<i64: 1, 32, 32>}, {pipeline_mode = #tpu.pipeline_mode<synchronous>, transform_indices = @transform_6, window_bounds = array<i64: 1, 32, 32>}, {pipeline_mode = #tpu.pipeline_mode<synchronous>, transform_indices = @transform_7, window_bounds = array<i64: 1, 3, 32>}, {pipeline_mode = #tpu.pipeline_mode<synchronous>, transform_indices = @transform_8, window_bounds = array<i64: 1, 32>}, {transform_indices = @transform_9, window_bounds = array<i64: 1, 8, 32>}]} {
    %c0 = arith.constant 0 : index
    %c0_0 = arith.constant 0 : index
    %c0_1 = arith.constant 0 : index
    %0 = vector.load %arg2[%c0, %c0_0, %c0_1] : memref<1x8x32xf32, #tpu.memory_space<vmem>>, vector<1x8x32xf32>
    %1 = vector.shape_cast %0 : vector<1x8x32xf32> to vector<8x32xf32>
    %c0_2 = arith.constant 0 : index
    %c0_3 = arith.constant 0 : index
    %c0_4 = arith.constant 0 : index
    %2 = vector.load %arg3[%c0_2, %c0_3, %c0_4] : memref<1x8x32xf32, #tpu.memory_space<vmem>>, vector<1x8x32xf32>
    %3 = vector.shape_cast %2 : vector<1x8x32xf32> to vector<8x32xf32>
    %c0_5 = arith.constant 0 : index
    %c0_6 = arith.constant 0 : index
    %c0_7 = arith.constant 0 : index
    %4 = vector.load %arg4[%c0_5, %c0_6, %c0_7] : memref<1x8x32xf32, #tpu.memory_space<vmem>>, vector<1x8x32xf32>
    %5 = vector.shape_cast %4 : vector<1x8x32xf32> to vector<8x32xf32>
    %6 = arith.index_cast %arg1 : i32 to index
    %c0_8 = arith.constant 0 : index
    %c0_9 = arith.constant 0 : index
    %7 = vector.load %arg5[%6, %c0_8, %c0_9] : memref<1x32x32xf32, #tpu.memory_space<vmem>>, vector<1x32x32xf32>
    %8 = vector.shape_cast %7 : vector<1x32x32xf32> to vector<32x32xf32>
    %9 = arith.index_cast %arg1 : i32 to index
    %c0_10 = arith.constant 0 : index
    %c0_11 = arith.constant 0 : index
    %10 = vector.load %arg6[%9, %c0_10, %c0_11] : memref<1x32x32xf32, #tpu.memory_space<vmem>>, vector<1x32x32xf32>
    %11 = vector.shape_cast %10 : vector<1x32x32xf32> to vector<32x32xf32>
    %12 = arith.index_cast %arg1 : i32 to index
    %c0_12 = arith.constant 0 : index
    %c0_13 = arith.constant 0 : index
    %13 = vector.load %arg7[%12, %c0_12, %c0_13] : memref<1x32x32xf32, #tpu.memory_space<vmem>>, vector<1x32x32xf32>
    %14 = vector.shape_cast %13 : vector<1x32x32xf32> to vector<32x32xf32>
    %15 = arith.index_cast %arg1 : i32 to index
    %c0_14 = arith.constant 0 : index
    %c0_15 = arith.constant 0 : index
    %16 = vector.load %arg8[%15, %c0_14, %c0_15] : memref<1x32x32xf32, #tpu.memory_space<vmem>>, vector<1x32x32xf32>
    %17 = vector.shape_cast %16 : vector<1x32x32xf32> to vector<32x32xf32>
    %18 = arith.index_cast %arg1 : i32 to index
    %c0_16 = arith.constant 0 : index
    %c0_17 = arith.constant 0 : index
    %19 = vector.load %arg9[%18, %c0_16, %c0_17] : memref<1x3x32xf32, #tpu.memory_space<vmem>>, vector<1x3x32xf32>
    %20 = vector.shape_cast %19 : vector<1x3x32xf32> to vector<3x32xf32>
    %cst = arith.constant dense<0.000000e+00> : vector<8x32xf32>
    %21 = tpu.matmul %1, %8, %cst {dimension_numbers = #tpu.dot_dimension_numbers<[1], [0], [0], [1], [0, 0, 1, 1], [], []>} : vector<8x32xf32>, vector<32x32xf32>, vector<8x32xf32> -> vector<8x32xf32>
    %22 = vector.extract_strided_slice %20 {offsets = [0, 0], sizes = [1, 32], strides = [1, 1]} : vector<3x32xf32> to vector<1x32xf32>
    %23 = vector.broadcast %22 : vector<1x32xf32> to vector<8x32xf32>
    %24 = arith.addf %21, %23 : vector<8x32xf32>
    %cst_18 = arith.constant 0.353553385 : f32
    %25 = vector.broadcast %cst_18 : f32 to vector<8x32xf32>
    %26 = arith.mulf %24, %25 : vector<8x32xf32>
    %cst_19 = arith.constant dense<0.000000e+00> : vector<8x32xf32>
    %27 = tpu.matmul %3, %11, %cst_19 {dimension_numbers = #tpu.dot_dimension_numbers<[1], [0], [0], [1], [0, 0, 1, 1], [], []>} : vector<8x32xf32>, vector<32x32xf32>, vector<8x32xf32> -> vector<8x32xf32>
    %28 = vector.extract_strided_slice %20 {offsets = [1, 0], sizes = [1, 32], strides = [1, 1]} : vector<3x32xf32> to vector<1x32xf32>
    %29 = vector.broadcast %28 : vector<1x32xf32> to vector<8x32xf32>
    %30 = arith.addf %27, %29 : vector<8x32xf32>
    %cst_20 = arith.constant dense<0.000000e+00> : vector<8x32xf32>
    %31 = tpu.matmul %5, %14, %cst_20 {dimension_numbers = #tpu.dot_dimension_numbers<[1], [0], [0], [1], [0, 0, 1, 1], [], []>} : vector<8x32xf32>, vector<32x32xf32>, vector<8x32xf32> -> vector<8x32xf32>
    %32 = vector.extract_strided_slice %20 {offsets = [2, 0], sizes = [1, 32], strides = [1, 1]} : vector<3x32xf32> to vector<1x32xf32>
    %33 = vector.broadcast %32 : vector<1x32xf32> to vector<8x32xf32>
    %34 = arith.addf %31, %33 : vector<8x32xf32>
    %35 = vector.extract_strided_slice %26 {offsets = [0, 0], sizes = [8, 8], strides = [1, 1]} : vector<8x32xf32> to vector<8x8xf32>
    %36 = vector.extract_strided_slice %30 {offsets = [0, 0], sizes = [8, 8], strides = [1, 1]} : vector<8x32xf32> to vector<8x8xf32>
    %37 = vector.extract_strided_slice %34 {offsets = [0, 0], sizes = [8, 8], strides = [1, 1]} : vector<8x32xf32> to vector<8x8xf32>
    %cst_21 = arith.constant dense<0.000000e+00> : vector<8x8xf32>
    %38 = tpu.matmul %35, %36, %cst_21 {dimension_numbers = #tpu.dot_dimension_numbers<[1], [1], [0], [0], [0, 0, 1, 0], [], []>} : vector<8x8xf32>, vector<8x8xf32>, vector<8x8xf32> -> vector<8x8xf32>
    %cst_22 = arith.constant dense<0xFF800000> : vector<8xf32>
    %39 = vector.multi_reduction <maximumf>, %38, %cst_22 [1] : vector<8x8xf32> to vector<8xf32>
    %40 = vector.shape_cast %39 : vector<8xf32> to vector<8x1xf32>
    %41 = vector.broadcast %40 : vector<8x1xf32> to vector<8x8xf32>
    %42 = arith.subf %38, %41 : vector<8x8xf32>
    %43 = math.exp %42 : vector<8x8xf32>
    %cst_23 = arith.constant dense<0.000000e+00> : vector<8xf32>
    %44 = vector.multi_reduction <add>, %43, %cst_23 [1] : vector<8x8xf32> to vector<8xf32>
    %45 = vector.shape_cast %44 : vector<8xf32> to vector<8x1xf32>
    %46 = tpu.reciprocal %45 {approx = true} : vector<8x1xf32> -> vector<8x1xf32>
    %47 = vector.broadcast %46 : vector<8x1xf32> to vector<8x8xf32>
    %48 = arith.mulf %43, %47 : vector<8x8xf32>
    %cst_24 = arith.constant dense<0.000000e+00> : vector<8x8xf32>
    %49 = tpu.matmul %48, %37, %cst_24 {dimension_numbers = #tpu.dot_dimension_numbers<[1], [0], [0], [1], [0, 0, 1, 1], [], []>} : vector<8x8xf32>, vector<8x8xf32>, vector<8x8xf32> -> vector<8x8xf32>
    %50 = vector.extract_strided_slice %26 {offsets = [0, 8], sizes = [8, 8], strides = [1, 1]} : vector<8x32xf32> to vector<8x8xf32>
    %51 = vector.extract_strided_slice %30 {offsets = [0, 8], sizes = [8, 8], strides = [1, 1]} : vector<8x32xf32> to vector<8x8xf32>
    %52 = vector.extract_strided_slice %34 {offsets = [0, 8], sizes = [8, 8], strides = [1, 1]} : vector<8x32xf32> to vector<8x8xf32>
    %cst_25 = arith.constant dense<0.000000e+00> : vector<8x8xf32>
    %53 = tpu.matmul %50, %51, %cst_25 {dimension_numbers = #tpu.dot_dimension_numbers<[1], [1], [0], [0], [0, 0, 1, 0], [], []>} : vector<8x8xf32>, vector<8x8xf32>, vector<8x8xf32> -> vector<8x8xf32>
    %cst_26 = arith.constant dense<0xFF800000> : vector<8xf32>
    %54 = vector.multi_reduction <maximumf>, %53, %cst_26 [1] : vector<8x8xf32> to vector<8xf32>
    %55 = vector.shape_cast %54 : vector<8xf32> to vector<8x1xf32>
    %56 = vector.broadcast %55 : vector<8x1xf32> to vector<8x8xf32>
    %57 = arith.subf %53, %56 : vector<8x8xf32>
    %58 = math.exp %57 : vector<8x8xf32>
    %cst_27 = arith.constant dense<0.000000e+00> : vector<8xf32>
    %59 = vector.multi_reduction <add>, %58, %cst_27 [1] : vector<8x8xf32> to vector<8xf32>
    %60 = vector.shape_cast %59 : vector<8xf32> to vector<8x1xf32>
    %61 = tpu.reciprocal %60 {approx = true} : vector<8x1xf32> -> vector<8x1xf32>
    %62 = vector.broadcast %61 : vector<8x1xf32> to vector<8x8xf32>
    %63 = arith.mulf %58, %62 : vector<8x8xf32>
    %cst_28 = arith.constant dense<0.000000e+00> : vector<8x8xf32>
    %64 = tpu.matmul %63, %52, %cst_28 {dimension_numbers = #tpu.dot_dimension_numbers<[1], [0], [0], [1], [0, 0, 1, 1], [], []>} : vector<8x8xf32>, vector<8x8xf32>, vector<8x8xf32> -> vector<8x8xf32>
    %65 = vector.extract_strided_slice %26 {offsets = [0, 16], sizes = [8, 8], strides = [1, 1]} : vector<8x32xf32> to vector<8x8xf32>
    %66 = vector.extract_strided_slice %30 {offsets = [0, 16], sizes = [8, 8], strides = [1, 1]} : vector<8x32xf32> to vector<8x8xf32>
    %67 = vector.extract_strided_slice %34 {offsets = [0, 16], sizes = [8, 8], strides = [1, 1]} : vector<8x32xf32> to vector<8x8xf32>
    %cst_29 = arith.constant dense<0.000000e+00> : vector<8x8xf32>
    %68 = tpu.matmul %65, %66, %cst_29 {dimension_numbers = #tpu.dot_dimension_numbers<[1], [1], [0], [0], [0, 0, 1, 0], [], []>} : vector<8x8xf32>, vector<8x8xf32>, vector<8x8xf32> -> vector<8x8xf32>
    %cst_30 = arith.constant dense<0xFF800000> : vector<8xf32>
    %69 = vector.multi_reduction <maximumf>, %68, %cst_30 [1] : vector<8x8xf32> to vector<8xf32>
    %70 = vector.shape_cast %69 : vector<8xf32> to vector<8x1xf32>
    %71 = vector.broadcast %70 : vector<8x1xf32> to vector<8x8xf32>
    %72 = arith.subf %68, %71 : vector<8x8xf32>
    %73 = math.exp %72 : vector<8x8xf32>
    %cst_31 = arith.constant dense<0.000000e+00> : vector<8xf32>
    %74 = vector.multi_reduction <add>, %73, %cst_31 [1] : vector<8x8xf32> to vector<8xf32>
    %75 = vector.shape_cast %74 : vector<8xf32> to vector<8x1xf32>
    %76 = tpu.reciprocal %75 {approx = true} : vector<8x1xf32> -> vector<8x1xf32>
    %77 = vector.broadcast %76 : vector<8x1xf32> to vector<8x8xf32>
    %78 = arith.mulf %73, %77 : vector<8x8xf32>
    %cst_32 = arith.constant dense<0.000000e+00> : vector<8x8xf32>
    %79 = tpu.matmul %78, %67, %cst_32 {dimension_numbers = #tpu.dot_dimension_numbers<[1], [0], [0], [1], [0, 0, 1, 1], [], []>} : vector<8x8xf32>, vector<8x8xf32>, vector<8x8xf32> -> vector<8x8xf32>
    %80 = vector.extract_strided_slice %26 {offsets = [0, 24], sizes = [8, 8], strides = [1, 1]} : vector<8x32xf32> to vector<8x8xf32>
    %81 = vector.extract_strided_slice %30 {offsets = [0, 24], sizes = [8, 8], strides = [1, 1]} : vector<8x32xf32> to vector<8x8xf32>
    %82 = vector.extract_strided_slice %34 {offsets = [0, 24], sizes = [8, 8], strides = [1, 1]} : vector<8x32xf32> to vector<8x8xf32>
    %cst_33 = arith.constant dense<0.000000e+00> : vector<8x8xf32>
    %83 = tpu.matmul %80, %81, %cst_33 {dimension_numbers = #tpu.dot_dimension_numbers<[1], [1], [0], [0], [0, 0, 1, 0], [], []>} : vector<8x8xf32>, vector<8x8xf32>, vector<8x8xf32> -> vector<8x8xf32>
    %cst_34 = arith.constant dense<0xFF800000> : vector<8xf32>
    %84 = vector.multi_reduction <maximumf>, %83, %cst_34 [1] : vector<8x8xf32> to vector<8xf32>
    %85 = vector.shape_cast %84 : vector<8xf32> to vector<8x1xf32>
    %86 = vector.broadcast %85 : vector<8x1xf32> to vector<8x8xf32>
    %87 = arith.subf %83, %86 : vector<8x8xf32>
    %88 = math.exp %87 : vector<8x8xf32>
    %cst_35 = arith.constant dense<0.000000e+00> : vector<8xf32>
    %89 = vector.multi_reduction <add>, %88, %cst_35 [1] : vector<8x8xf32> to vector<8xf32>
    %90 = vector.shape_cast %89 : vector<8xf32> to vector<8x1xf32>
    %91 = tpu.reciprocal %90 {approx = true} : vector<8x1xf32> -> vector<8x1xf32>
    %92 = vector.broadcast %91 : vector<8x1xf32> to vector<8x8xf32>
    %93 = arith.mulf %88, %92 : vector<8x8xf32>
    %cst_36 = arith.constant dense<0.000000e+00> : vector<8x8xf32>
    %94 = tpu.matmul %93, %82, %cst_36 {dimension_numbers = #tpu.dot_dimension_numbers<[1], [0], [0], [1], [0, 0, 1, 1], [], []>} : vector<8x8xf32>, vector<8x8xf32>, vector<8x8xf32> -> vector<8x8xf32>
    %95 = tpu.concatenate %49, %64, %79, %94 in 1 : vector<8x8xf32>, vector<8x8xf32>, vector<8x8xf32>, vector<8x8xf32> -> vector<8x32xf32>
    %cst_37 = arith.constant dense<0.000000e+00> : vector<8x32xf32>
    %96 = tpu.matmul %95, %17, %cst_37 {dimension_numbers = #tpu.dot_dimension_numbers<[1], [0], [0], [1], [0, 0, 1, 1], [], []>} : vector<8x32xf32>, vector<32x32xf32>, vector<8x32xf32> -> vector<8x32xf32>
    %c0_i32 = arith.constant 0 : i32
    %97 = arith.cmpi eq, %arg1, %c0_i32 : i32
    %98 = arith.extui %97 : i1 to i32
    %c0_i32_38 = arith.constant 0 : i32
    %99 = arith.cmpi ne, %98, %c0_i32_38 : i32
    scf.if %99 {
      %c0_41 = arith.constant 0 : index
      %c0_42 = arith.constant 0 : index
      %103 = vector.load %arg10[%c0_41, %c0_42] : memref<1x32xf32, #tpu.memory_space<vmem>>, vector<1x32xf32>
      %104 = vector.broadcast %103 : vector<1x32xf32> to vector<8x32xf32>
      %105 = arith.addf %96, %104 : vector<8x32xf32>
      %c0_43 = arith.constant 0 : index
      %c0_44 = arith.constant 0 : index
      %c0_45 = arith.constant 0 : index
      %106 = vector.load %arg11[%c0_43, %c0_44, %c0_45] : memref<1x8x32xf32, #tpu.memory_space<vmem>>, vector<1x8x32xf32>
      %107 = vector.shape_cast %106 : vector<1x8x32xf32> to vector<8x32xf32>
      %108 = vector.shape_cast %105 : vector<8x32xf32> to vector<1x8x32xf32>
      tpu.vector_store %arg11[%c0_43, %c0_44, %c0_45], %108 {strides = array<i32>} : memref<1x8x32xf32, #tpu.memory_space<vmem>>, vector<1x8x32xf32>,
    } else {
    }
    %c0_i32_39 = arith.constant 0 : i32
    %100 = arith.cmpi ne, %arg1, %c0_i32_39 : i32
    %101 = arith.extui %100 : i1 to i32
    %c0_i32_40 = arith.constant 0 : i32
    %102 = arith.cmpi ne, %101, %c0_i32_40 : i32
    scf.if %102 {
      %c0_41 = arith.constant 0 : index
      %c0_42 = arith.constant 0 : index
      %c0_43 = arith.constant 0 : index
      %103 = vector.load %arg11[%c0_41, %c0_42, %c0_43] : memref<1x8x32xf32, #tpu.memory_space<vmem>>, vector<1x8x32xf32>
      %104 = vector.shape_cast %103 : vector<1x8x32xf32> to vector<8x32xf32>
      %105 = arith.addf %104, %96 : vector<8x32xf32>
      %c0_44 = arith.constant 0 : index
      %c0_45 = arith.constant 0 : index
      %c0_46 = arith.constant 0 : index
      %106 = vector.load %arg11[%c0_44, %c0_45, %c0_46] : memref<1x8x32xf32, #tpu.memory_space<vmem>>, vector<1x8x32xf32>
      %107 = vector.shape_cast %106 : vector<1x8x32xf32> to vector<8x32xf32>
      %108 = vector.shape_cast %105 : vector<8x32xf32> to vector<1x8x32xf32>
      tpu.vector_store %arg11[%c0_44, %c0_45, %c0_46], %108 {strides = array<i32>} : memref<1x8x32xf32, #tpu.memory_space<vmem>>, vector<1x8x32xf32>,
    } else {
    }
    return
  }
  func.func @transform_0(%arg0: i32, %arg1: i32) -> (i32, i32, i32) {
    %c0_i32 = arith.constant 0 : i32
    %c0_i32_0 = arith.constant 0 : i32
    %c0_i32_1 = arith.constant 0 : i32
    return %arg0, %c0_i32, %c0_i32_0 : i32, i32, i32
  }
  func.func @transform_1(%arg0: i32, %arg1: i32) -> (i32, i32, i32) {
    %c0_i32 = arith.constant 0 : i32
    %c0_i32_0 = arith.constant 0 : i32
    %c0_i32_1 = arith.constant 0 : i32
    return %arg0, %c0_i32, %c0_i32_0 : i32, i32, i32
  }
  func.func @transform_2(%arg0: i32, %arg1: i32) -> (i32, i32, i32) {
    %c0_i32 = arith.constant 0 : i32
    %c0_i32_0 = arith.constant 0 : i32
    %c0_i32_1 = arith.constant 0 : i32
    return %arg0, %c0_i32, %c0_i32_0 : i32, i32, i32
  }
  func.func @transform_3(%arg0: i32, %arg1: i32) -> (i32, i32, i32) {
    %c0_i32 = arith.constant 0 : i32
    %c0_i32_0 = arith.constant 0 : i32
    %c0_i32_1 = arith.constant 0 : i32
    %c0_i32_2 = arith.constant 0 : i32
    return %c0_i32, %c0_i32_0, %c0_i32_1 : i32, i32, i32
  }
  func.func @transform_4(%arg0: i32, %arg1: i32) -> (i32, i32, i32) {
    %c0_i32 = arith.constant 0 : i32
    %c0_i32_0 = arith.constant 0 : i32
    %c0_i32_1 = arith.constant 0 : i32
    %c0_i32_2 = arith.constant 0 : i32
    return %c0_i32, %c0_i32_0, %c0_i32_1 : i32, i32, i32
  }
  func.func @transform_5(%arg0: i32, %arg1: i32) -> (i32, i32, i32) {
    %c0_i32 = arith.constant 0 : i32
    %c0_i32_0 = arith.constant 0 : i32
    %c0_i32_1 = arith.constant 0 : i32
    %c0_i32_2 = arith.constant 0 : i32
    return %c0_i32, %c0_i32_0, %c0_i32_1 : i32, i32, i32
  }
  func.func @transform_6(%arg0: i32, %arg1: i32) -> (i32, i32, i32) {
    %c0_i32 = arith.constant 0 : i32
    %c0_i32_0 = arith.constant 0 : i32
    %c0_i32_1 = arith.constant 0 : i32
    %c0_i32_2 = arith.constant 0 : i32
    return %c0_i32, %c0_i32_0, %c0_i32_1 : i32, i32, i32
  }
  func.func @transform_7(%arg0: i32, %arg1: i32) -> (i32, i32, i32) {
    %c0_i32 = arith.constant 0 : i32
    %c0_i32_0 = arith.constant 0 : i32
    %c0_i32_1 = arith.constant 0 : i32
    %c0_i32_2 = arith.constant 0 : i32
    return %c0_i32, %c0_i32_0, %c0_i32_1 : i32, i32, i32
  }
  func.func @transform_8(%arg0: i32, %arg1: i32) -> (i32, i32) {
    %c0_i32 = arith.constant 0 : i32
    %c0_i32_0 = arith.constant 0 : i32
    %c0_i32_1 = arith.constant 0 : i32
    return %c0_i32, %c0_i32_0 : i32, i32
  }
  func.func @transform_9(%arg0: i32, %arg1: i32) -> (i32, i32, i32) {
    %c0_i32 = arith.constant 0 : i32
    %c0_i32_0 = arith.constant 0 : i32
    %c0_i32_1 = arith.constant 0 : i32
    return %arg0, %c0_i32, %c0_i32_0 : i32, i32, i32
  }
}

</mosaic_0001>

<llo_original>
// kernel: tpu_custom_call.1
$region0: #{tpu_custom_call.1}
  #allocation0 [shape = 'u32[]', space=smem, size = 0x4, offset = 0x4, fixed_abs, tag = 'smem constant byte address 0x4 - core index']
  #allocation1 [shape = 'u32[144,128]{1,0:T(1,128)}', space=vmem, size = 0x12000, scoped, tag = 'internal scratch']
  %s0 = inlined_call_operand.hbm [shape: f32[2,8,32], index: 0, kind: input, shape index: {}]
  %s1 = inlined_call_operand.hbm [shape: f32[2,8,32], index: 1, kind: input, shape index: {}]
  %s2 = inlined_call_operand.hbm [shape: f32[2,8,32], index: 2, kind: input, shape index: {}]
  %s3 = inlined_call_operand.hbm [shape: f32[1,32,32], index: 3, kind: input, shape index: {}]
  %s4 = inlined_call_operand.hbm [shape: f32[1,32,32], index: 4, kind: input, shape index: {}]
  %s5 = inlined_call_operand.hbm [shape: f32[1,32,32], index: 5, kind: input, shape index: {}]
  %s6 = inlined_call_operand.hbm [shape: f32[1,32,32], index: 6, kind: input, shape index: {}]
  %s7 = inlined_call_operand.vmem [shape: f32[1,3,32], index: 7, kind: input, shape index: {}]
  %s8 = inlined_call_operand.vmem [shape: f32[1,32], index: 8, kind: input, shape index: {}]
  %s9 = inlined_call_operand.hbm [shape: f32[2,8,32], index: 9, kind: output, shape index: {}]
  %s10 = sld [smem:[#allocation0]]
  $region105: #{tpu_custom_call.1} parent=0
    _
  %s12 = ssub.s32 1, %s10
  %s13 = scalar_select 0, %s12, %s10
  $region1: #{tpu_custom_call.1} parent=0
    #allocation2 [shape = 'u8[8192]{0}', space=vmem, size = 0x2000, scoped, tag = 'input window, operand 0']
    #allocation3 [shape = 's32[2]{0}', space=sflag, size = 0x8, scoped, tag = 'scoped memory for tpu_custom_call.1']
    #allocation4 [shape = 's32[2]{0}', space=sflag, size = 0x8, scoped, tag = 'scoped memory for tpu_custom_call.1']
    #allocation5 [shape = 'u8[8192]{0}', space=vmem, size = 0x2000, scoped, tag = 'input window, operand 1']
    #allocation6 [shape = 's32[2]{0}', space=sflag, size = 0x8, scoped, tag = 'scoped memory for tpu_custom_call.1']
    #allocation7 [shape = 'u8[8192]{0}', space=vmem, size = 0x2000, scoped, tag = 'input window, operand 2']
    #allocation8 [shape = 'u8[16384]{0}', space=vmem, size = 0x4000, scoped, tag = 'input window, operand 3, single buffered']
    #allocation9 [shape = 's32[1]{0}', space=sflag, size = 0x4, scoped, tag = 'scoped memory for tpu_custom_call.1']
    #allocation10 [shape = 'u8[16384]{0}', space=vmem, size = 0x4000, scoped, tag = 'input window, operand 4, single buffered']
    #allocation11 [shape = 'u8[16384]{0}', space=vmem, size = 0x4000, scoped, tag = 'input window, operand 5, single buffered']
    #allocation12 [shape = 's32[1]{0}', space=sflag, size = 0x4, scoped, tag = 'scoped memory for tpu_custom_call.1']
    #allocation13 [shape = 'u8[16384]{0}', space=vmem, size = 0x4000, scoped, tag = 'input window, operand 6, single buffered']
    #allocation14 [shape = 'u8[8192]{0}', space=vmem, size = 0x2000, scoped, tag = 'output window, operand 0']
    %14 = vsyncpa [#allocation3], 0
    %s15 = scalar_lea.sflag [#allocation3], 1
    %16 = vsyncpa %s15, 0
    %17 = vsyncpa [#allocation6], 0
    %s18 = scalar_lea.sflag [#allocation6], 1
    %19 = vsyncpa %s18, 0
    %20 = vsyncpa [#allocation9], 0
    %21 = vsyncpa [#allocation12], 0
    %22 = vsyncpa [#allocation4], 0
    %s23 = scalar_lea.sflag [#allocation4], 1
    %24 = vsyncpa %s23, 0
    loop: start=0, step=1, limit=4
    $region2: #{tpu_custom_call.1} parent=1 // loop_pre_header
      _
    $region3: #{tpu_custom_call.1} parent=1 // loop_header
      %s26 = sphi 0, %s30
      %p27 = scmp.ge.s32.totalorder %s26, 4
      %s33 = sphi 0, %s45
      %s34 = sphi 0, %s41
      %s35 = sphi 0, %s33
      %s36 = sphi 0, %s34
      %s37 = sphi 0, %s35
      %s38 = sphi 0, %s36
      %s48 = sphi 0, %s50
      %s51 = sphi 0, %s48
      %s52 = sphi 0, %s51
      %s68 = sphi 0, %s52
      %s74 = sphi 0, %s76
      %s77 = sphi 0, %s74
      %s78 = sphi 0, %s77
      %s94 = sphi 0, %s78
      %s100 = sphi 0, %s102
      %s103 = sphi 0, %s100
      %s104 = sphi 0, %s103
      %s120 = sphi 0, %s104
      %s124 = sphi 0, %s124
      %s126 = sphi 0, %s124
      %s127 = sphi 0, %s126
      %s141 = sphi 0, %s127
      %s145 = sphi 0, %s145
      %s147 = sphi 0, %s145
      %s148 = sphi 0, %s147
      %s162 = sphi 0, %s148
      %s166 = sphi 0, %s166
      %s168 = sphi 0, %s166
      %s169 = sphi 0, %s168
      %s183 = sphi 0, %s169
      %s187 = sphi 0, %s187
      %s189 = sphi 0, %s187
      %s190 = sphi 0, %s189
      %s204 = sphi 0, %s190
      %s208 = sphi 0, %s208
      %s210 = sphi 0, %s208
      %s211 = sphi 0, %s210
      %s225 = sphi 0, %s211
      %s229 = sphi 0, %s229
      %s231 = sphi 0, %s229
      %s232 = sphi 0, %s231
      %s246 = sphi 0, %s232
      %s252 = sphi 0, %s254
      %s255 = sphi 0, %s252
      %s256 = sphi 0, %s255
      %s272 = sphi 0, %s256
    $region4: #{tpu_custom_call.1} parent=1 // loop_header_branch
      %29 = sbr.rel (%p27) target = $region8
    $region5: #{tpu_custom_call.1} parent=1 // loop_body
      %s31 = ssub.s32 %s26, 1
      %s32 = ssub.s32 %s26, 2
      %s39 = sadd.s32 1, %s34
      %p40 = scmp.ge.s32.totalorder %s39, 1
      %s41 = scalar_select %p40, 0, %s39
      %s42 = sadd.s32 1, %s33
      %s43 = scalar_select %p40, %s42, %s33
      %p44 = scmp.ge.s32.totalorder %s43, 2
      %s45 = scalar_select %p44, 0, %s43
      %s46 = ssub.s32 %s33, %s45
      %p47 = scmp.eq.s32.totalorder %s46, 0
      %s49 = sadd.s32 %s48, 1
      %s50 = scalar_select %p47, %s48, %s49
      %p53 = pneg %p47
      %p54 = scmp.eq.s32.totalorder %s26, 1
      %p55 = por %p53, %p54
      %p56 = scmp.ne.s32.totalorder %s48, %s51
      %p57 = scmp.eq.s32.totalorder %s26, 0
      %p58 = por %p56, %p57
      %p59 = scmp.ne.s32.totalorder %s48, %s51
      %p60 = scmp.eq.s32.totalorder %s31, 1
      %p61 = por %p59, %p60
      %p62 = scmp.ne.s32.totalorder %s51, %s52
      %p63 = scmp.eq.s32.totalorder %s31, 0
      %p64 = por %p62, %p63
      %p65 = scmp.ne.s32.totalorder %s51, %s52
      %p66 = scmp.eq.s32.totalorder %s32, 1
      %p67 = por %p65, %p66
      %p69 = scmp.ne.s32.totalorder %s52, %s68
      %p70 = scmp.eq.s32.totalorder %s32, 0
      %p71 = por %p69, %p70
      %s72 = ssub.s32 %s33, %s45
      %p73 = scmp.eq.s32.totalorder %s72, 0
      %s75 = sadd.s32 %s74, 1
      %s76 = scalar_select %p73, %s74, %s75
      %p79 = pneg %p73
      %p80 = scmp.eq.s32.totalorder %s26, 1
      %p81 = por %p79, %p80
      %p82 = scmp.ne.s32.totalorder %s74, %s77
      %p83 = scmp.eq.s32.totalorder %s26, 0
      %p84 = por %p82, %p83
      %p85 = scmp.ne.s32.totalorder %s74, %s77
      %p86 = scmp.eq.s32.totalorder %s31, 1
      %p87 = por %p85, %p86
      %p88 = scmp.ne.s32.totalorder %s77, %s78
      %p89 = scmp.eq.s32.totalorder %s31, 0
      %p90 = por %p88, %p89
      %p91 = scmp.ne.s32.totalorder %s77, %s78
      %p92 = scmp.eq.s32.totalorder %s32, 1
      %p93 = por %p91, %p92
      %p95 = scmp.ne.s32.totalorder %s78, %s94
      %p96 = scmp.eq.s32.totalorder %s32, 0
      %p97 = por %p95, %p96
      %s98 = ssub.s32 %s33, %s45
      %p99 = scmp.eq.s32.totalorder %s98, 0
      %s101 = sadd.s32 %s100, 1
      %s102 = scalar_select %p99, %s100, %s101
      %p105 = pneg %p99
      %p106 = scmp.eq.s32.totalorder %s26, 1
      %p107 = por %p105, %p106
      %p108 = scmp.ne.s32.totalorder %s100, %s103
      %p109 = scmp.eq.s32.totalorder %s26, 0
      %p110 = por %p108, %p109
      %p111 = scmp.ne.s32.totalorder %s100, %s103
      %p112 = scmp.eq.s32.totalorder %s31, 1
      %p113 = por %p111, %p112
      %p114 = scmp.ne.s32.totalorder %s103, %s104
      %p115 = scmp.eq.s32.totalorder %s31, 0
      %p116 = por %p114, %p115
      %p117 = scmp.ne.s32.totalorder %s103, %s104
      %p118 = scmp.eq.s32.totalorder %s32, 1
      %p119 = por %p117, %p118
      %p121 = scmp.ne.s32.totalorder %s104, %s120
      %p122 = scmp.eq.s32.totalorder %s32, 0
      %p123 = por %p121, %p122
      %s125 = sadd.s32 %s124, 1
      %p128 = scmp.eq.s32.totalorder %s26, 1
      %p129 = scmp.ne.s32.totalorder %s124, %s126
      %p130 = scmp.eq.s32.totalorder %s26, 0
      %p131 = por %p129, %p130
      %p132 = scmp.ne.s32.totalorder %s124, %s126
      %p133 = scmp.eq.s32.totalorder %s31, 1
      %p134 = por %p132, %p133
      %p135 = scmp.ne.s32.totalorder %s126, %s127
      %p136 = scmp.eq.s32.totalorder %s31, 0
      %p137 = por %p135, %p136
      %p138 = scmp.ne.s32.totalorder %s126, %s127
      %p139 = scmp.eq.s32.totalorder %s32, 1
      %p140 = por %p138, %p139
      %p142 = scmp.ne.s32.totalorder %s127, %s141
      %p143 = scmp.eq.s32.totalorder %s32, 0
      %p144 = por %p142, %p143
      %s146 = sadd.s32 %s145, 1
      %p149 = scmp.eq.s32.totalorder %s26, 1
      %p150 = scmp.ne.s32.totalorder %s145, %s147
      %p151 = scmp.eq.s32.totalorder %s26, 0
      %p152 = por %p150, %p151
      %p153 = scmp.ne.s32.totalorder %s145, %s147
      %p154 = scmp.eq.s32.totalorder %s31, 1
      %p155 = por %p153, %p154
      %p156 = scmp.ne.s32.totalorder %s147, %s148
      %p157 = scmp.eq.s32.totalorder %s31, 0
      %p158 = por %p156, %p157
      %p159 = scmp.ne.s32.totalorder %s147, %s148
      %p160 = scmp.eq.s32.totalorder %s32, 1
      %p161 = por %p159, %p160
      %p163 = scmp.ne.s32.totalorder %s148, %s162
      %p164 = scmp.eq.s32.totalorder %s32, 0
      %p165 = por %p163, %p164
      %s167 = sadd.s32 %s166, 1
      %p170 = scmp.eq.s32.totalorder %s26, 1
      %p171 = scmp.ne.s32.totalorder %s166, %s168
      %p172 = scmp.eq.s32.totalorder %s26, 0
      %p173 = por %p171, %p172
      %p174 = scmp.ne.s32.totalorder %s166, %s168
      %p175 = scmp.eq.s32.totalorder %s31, 1
      %p176 = por %p174, %p175
      %p177 = scmp.ne.s32.totalorder %s168, %s169
      %p178 = scmp.eq.s32.totalorder %s31, 0
      %p179 = por %p177, %p178
      %p180 = scmp.ne.s32.totalorder %s168, %s169
      %p181 = scmp.eq.s32.totalorder %s32, 1
      %p182 = por %p180, %p181
      %p184 = scmp.ne.s32.totalorder %s169, %s183
      %p185 = scmp.eq.s32.totalorder %s32, 0
      %p186 = por %p184, %p185
      %s188 = sadd.s32 %s187, 1
      %p191 = scmp.eq.s32.totalorder %s26, 1
      %p192 = scmp.ne.s32.totalorder %s187, %s189
      %p193 = scmp.eq.s32.totalorder %s26, 0
      %p194 = por %p192, %p193
      %p195 = scmp.ne.s32.totalorder %s187, %s189
      %p196 = scmp.eq.s32.totalorder %s31, 1
      %p197 = por %p195, %p196
      %p198 = scmp.ne.s32.totalorder %s189, %s190
      %p199 = scmp.eq.s32.totalorder %s31, 0
      %p200 = por %p198, %p199
      %p201 = scmp.ne.s32.totalorder %s189, %s190
      %p202 = scmp.eq.s32.totalorder %s32, 1
      %p203 = por %p201, %p202
      %p205 = scmp.ne.s32.totalorder %s190, %s204
      %p206 = scmp.eq.s32.totalorder %s32, 0
      %p207 = por %p205, %p206
      %s209 = sadd.s32 %s208, 1
      %p212 = scmp.eq.s32.totalorder %s26, 1
      %p213 = scmp.ne.s32.totalorder %s208, %s210
      %p214 = scmp.eq.s32.totalorder %s26, 0
      %p215 = por %p213, %p214
      %p216 = scmp.ne.s32.totalorder %s208, %s210
      %p217 = scmp.eq.s32.totalorder %s31, 1
      %p218 = por %p216, %p217
      %p219 = scmp.ne.s32.totalorder %s210, %s211
      %p220 = scmp.eq.s32.totalorder %s31, 0
      %p221 = por %p219, %p220
      %p222 = scmp.ne.s32.totalorder %s210, %s211
      %p223 = scmp.eq.s32.totalorder %s32, 1
      %p224 = por %p222, %p223
      %p226 = scmp.ne.s32.totalorder %s211, %s225
      %p227 = scmp.eq.s32.totalorder %s32, 0
      %p228 = por %p226, %p227
      %s230 = sadd.s32 %s229, 1
      %p233 = scmp.eq.s32.totalorder %s26, 1
      %p234 = scmp.ne.s32.totalorder %s229, %s231
      %p235 = scmp.eq.s32.totalorder %s26, 0
      %p236 = por %p234, %p235
      %p237 = scmp.ne.s32.totalorder %s229, %s231
      %p238 = scmp.eq.s32.totalorder %s31, 1
      %p239 = por %p237, %p238
      %p240 = scmp.ne.s32.totalorder %s231, %s232
      %p241 = scmp.eq.s32.totalorder %s31, 0
      %p242 = por %p240, %p241
      %p243 = scmp.ne.s32.totalorder %s231, %s232
      %p244 = scmp.eq.s32.totalorder %s32, 1
      %p245 = por %p243, %p244
      %p247 = scmp.ne.s32.totalorder %s232, %s246
      %p248 = scmp.eq.s32.totalorder %s32, 0
      %p249 = por %p247, %p248
      %s250 = ssub.s32 %s33, %s45
      %p251 = scmp.eq.s32.totalorder %s250, 0
      %s253 = sadd.s32 %s252, 1
      %s254 = scalar_select %p251, %s252, %s253
      %p257 = pneg %p251
      %p258 = scmp.eq.s32.totalorder %s26, 1
      %p259 = por %p257, %p258
      %p260 = scmp.ne.s32.totalorder %s252, %s255
      %p261 = scmp.eq.s32.totalorder %s26, 0
      %p262 = por %p260, %p261
      %p263 = scmp.ne.s32.totalorder %s252, %s255
      %p264 = scmp.eq.s32.totalorder %s31, 1
      %p265 = por %p263, %p264
      %p266 = scmp.ne.s32.totalorder %s255, %s256
      %p267 = scmp.eq.s32.totalorder %s31, 0
      %p268 = por %p266, %p267
      %p269 = scmp.ne.s32.totalorder %s255, %s256
      %p270 = scmp.eq.s32.totalorder %s32, 1
      %p271 = por %p269, %p270
      %p273 = scmp.ne.s32.totalorder %s256, %s272
      %p274 = scmp.eq.s32.totalorder %s32, 0
      %p275 = por %p273, %p274
      %p276 = scmp.le.s32.totalorder 1, %s26
      %p277 = scmp.lt.s32.totalorder %s26, 3
      %p278 = pnand %p276, %p277
      %p279 = pneg %p278
      // Predicated region
      $region9: #{tpu_custom_call.1} parent=5 // pred_check
        _
      $region10: #{tpu_custom_call.1} parent=5 // pred_check_branch
        %281 = sbr.rel (%p278) target = $region12
      $region11: #{tpu_custom_call.1} parent=5 // pred_region
        %s282 = ssub.s32 %s26, 1
        // Predicated region
        $region13: #{tpu_custom_call.1} parent=11 // pred_check
          %p283 = pneg %p137
        $region14: #{tpu_custom_call.1} parent=11 // pred_check_branch
          %285 = sbr.rel (%p283) target = $region16
        $region15: #{tpu_custom_call.1} parent=11 // pred_region
          %s287 = ssub.s32 512, 512
          %288 = vsyncadd [#allocation9], %s287
          %s289 = sshll.u32 [#allocation8], 4
          %s290 = int_to_ptr.vmem [resolvable:$true] %s289
          %295 = dma.hbm_to_vmem [thread:$0]  %s3, 512, %s290, [#allocation9], 128, 128, 8
        $region16: #{tpu_custom_call.1} parent=11 // pred_fallthru
          _
        // Predicated region
        $region17: #{tpu_custom_call.1} parent=11 // pred_check
          %p296 = pneg %p158
        $region18: #{tpu_custom_call.1} parent=11 // pred_check_branch
          %298 = sbr.rel (%p296) target = $region20
        $region19: #{tpu_custom_call.1} parent=11 // pred_region
          %s300 = ssub.s32 512, 512
          %301 = vsyncadd [#allocation9], %s300
          %s302 = sshll.u32 [#allocation10], 4
          %s303 = int_to_ptr.vmem [resolvable:$true] %s302
          %308 = dma.hbm_to_vmem [thread:$0]  %s4, 512, %s303, [#allocation9], 128, 128, 8
        $region20: #{tpu_custom_call.1} parent=11 // pred_fallthru
          _
        // Predicated region
        $region21: #{tpu_custom_call.1} parent=11 // pred_check
          %p309 = pneg %p179
        $region22: #{tpu_custom_call.1} parent=11 // pred_check_branch
          %311 = sbr.rel (%p309) target = $region24
        $region23: #{tpu_custom_call.1} parent=11 // pred_region
          %s313 = ssub.s32 512, 512
          %314 = vsyncadd [#allocation12], %s313
          %s315 = sshll.u32 [#allocation11], 4
          %s316 = int_to_ptr.vmem [resolvable:$true] %s315
          %321 = dma.hbm_to_vmem [thread:$0]  %s5, 512, %s316, [#allocation12], 128, 128, 8
        $region24: #{tpu_custom_call.1} parent=11 // pred_fallthru
          _
        // Predicated region
        $region25: #{tpu_custom_call.1} parent=11 // pred_check
          %p322 = pneg %p200
        $region26: #{tpu_custom_call.1} parent=11 // pred_check_branch
          %324 = sbr.rel (%p322) target = $region28
        $region27: #{tpu_custom_call.1} parent=11 // pred_region
          %s326 = ssub.s32 512, 512
          %327 = vsyncadd [#allocation12], %s326
          %s328 = sshll.u32 [#allocation13], 4
          %s329 = int_to_ptr.vmem [resolvable:$true] %s328
          %334 = dma.hbm_to_vmem [thread:$0]  %s6, 512, %s329, [#allocation12], 128, 128, 8
        $region28: #{tpu_custom_call.1} parent=11 // pred_fallthru
          _
        // Predicated region
        $region29: #{tpu_custom_call.1} parent=11 // pred_check
          %p335 = pneg %p221
        $region30: #{tpu_custom_call.1} parent=11 // pred_check_branch
          %337 = sbr.rel (%p335) target = $region32
        $region31: #{tpu_custom_call.1} parent=11 // pred_region
          _
        $region32: #{tpu_custom_call.1} parent=11 // pred_fallthru
          _
        // Predicated region
        $region33: #{tpu_custom_call.1} parent=11 // pred_check
          %p338 = pneg %p242
        $region34: #{tpu_custom_call.1} parent=11 // pred_check_branch
          %340 = sbr.rel (%p338) target = $region36
        $region35: #{tpu_custom_call.1} parent=11 // pred_region
          _
        $region36: #{tpu_custom_call.1} parent=11 // pred_fallthru
          _
      $region12: #{tpu_custom_call.1} parent=5 // pred_fallthru
        _
      %p341 = scmp.lt.s32.totalorder %s26, 2
      // Predicated region
      $region37: #{tpu_custom_call.1} parent=5 // pred_check
        %p342 = pneg %p341
      $region38: #{tpu_custom_call.1} parent=5 // pred_check_branch
        %344 = sbr.rel (%p342) target = $region40
      $region39: #{tpu_custom_call.1} parent=5 // pred_region
        // Predicated region
        $region41: #{tpu_custom_call.1} parent=39 // pred_check
          %p345 = pneg %p58
        $region42: #{tpu_custom_call.1} parent=39 // pred_check_branch
          %347 = sbr.rel (%p345) target = $region44
        $region43: #{tpu_custom_call.1} parent=39 // pred_region
          %s348 = sand.u32 %s48, 1
          %s349 = scalar_lea.sflag [#allocation3], %s348
          %s350 = sand.u32 %s48, 1
          %s351 = smul.addr %s350, 8
          %s352 = scalar_lea.vmem [#allocation2], %s351
          %s354 = ssub.s32 128, 128
          %355 = vsyncadd %s349, %s354
          %s356 = smul.addr %s33, 128
          %s357 = scalar_lea.hbm %s0, %s356
          %s359 = sshll.u32 %s352, 4
          %s360 = int_to_ptr.vmem [resolvable:$true] %s359
          %362 = dma.hbm_to_vmem [thread:$0]  %s357, 128, %s360, %s349
        $region44: #{tpu_custom_call.1} parent=39 // pred_fallthru
          _
        // Predicated region
        $region45: #{tpu_custom_call.1} parent=39 // pred_check
          %p363 = pneg %p84
        $region46: #{tpu_custom_call.1} parent=39 // pred_check_branch
          %365 = sbr.rel (%p363) target = $region48
        $region47: #{tpu_custom_call.1} parent=39 // pred_region
          %s366 = sand.u32 %s26, 1
          %s367 = scalar_lea.sflag [#allocation6], %s366
          %s368 = sand.u32 %s74, 1
          %s369 = smul.addr %s368, 8
          %s370 = scalar_lea.vmem [#allocation5], %s369
          %s372 = ssub.s32 128, 128
          %373 = vsyncadd %s367, %s372
          %s374 = smul.addr %s33, 128
          %s375 = scalar_lea.hbm %s1, %s374
          %s377 = sshll.u32 %s370, 4
          %s378 = int_to_ptr.vmem [resolvable:$true] %s377
          %380 = dma.hbm_to_vmem [thread:$0]  %s375, 128, %s378, %s367
        $region48: #{tpu_custom_call.1} parent=39 // pred_fallthru
          _
        // Predicated region
        $region49: #{tpu_custom_call.1} parent=39 // pred_check
          %p381 = pneg %p110
        $region50: #{tpu_custom_call.1} parent=39 // pred_check_branch
          %383 = sbr.rel (%p381) target = $region52
        $region51: #{tpu_custom_call.1} parent=39 // pred_region
          %s384 = sand.u32 %s26, 1
          %s385 = scalar_lea.sflag [#allocation6], %s384
          %s386 = sand.u32 %s100, 1
          %s387 = smul.addr %s386, 8
          %s388 = scalar_lea.vmem [#allocation7], %s387
          %s390 = ssub.s32 128, 128
          %391 = vsyncadd %s385, %s390
          %s392 = smul.addr %s33, 128
          %s393 = scalar_lea.hbm %s2, %s392
          %s395 = sshll.u32 %s388, 4
          %s396 = int_to_ptr.vmem [resolvable:$true] %s395
          %398 = dma.hbm_to_vmem [thread:$0]  %s393, 128, %s396, %s385
        $region52: #{tpu_custom_call.1} parent=39 // pred_fallthru
          _
      $region40: #{tpu_custom_call.1} parent=5 // pred_fallthru
        _
      %p399 = scmp.le.s32.totalorder 1, %s26
      %p400 = scmp.lt.s32.totalorder %s26, 3
      %p401 = pnand %p399, %p400
      %p402 = pneg %p401
      // Predicated region
      $region53: #{tpu_custom_call.1} parent=5 // pred_check
        _
      $region54: #{tpu_custom_call.1} parent=5 // pred_check_branch
        %404 = sbr.rel (%p401) target = $region56
      $region55: #{tpu_custom_call.1} parent=5 // pred_region
        %s405 = ssub.s32 %s26, 1
        %s406 = sand.u32 %s51, 1
        %s407 = scalar_lea.sflag [#allocation3], %s406
        %s408 = sand.u32 %s51, 1
        %s409 = smul.addr %s408, 8
        %s410 = scalar_lea.vmem [#allocation2], %s409
        // Predicated region
        $region57: #{tpu_custom_call.1} parent=55 // pred_check
          %p411 = pneg %p64
        $region58: #{tpu_custom_call.1} parent=55 // pred_check_branch
          %413 = sbr.rel (%p411) target = $region60
        $region59: #{tpu_custom_call.1} parent=55 // pred_region
          %414 = dma.done %s407, 128
        $region60: #{tpu_custom_call.1} parent=55 // pred_fallthru
          _
        %s415 = sand.u32 %s31, 1
        %s416 = scalar_lea.sflag [#allocation6], %s415
        %s417 = sand.u32 %s77, 1
        %s418 = smul.addr %s417, 8
        %s419 = scalar_lea.vmem [#allocation5], %s418
        // Predicated region
        $region61: #{tpu_custom_call.1} parent=55 // pred_check
          %p420 = pneg %p90
        $region62: #{tpu_custom_call.1} parent=55 // pred_check_branch
          %422 = sbr.rel (%p420) target = $region64
        $region63: #{tpu_custom_call.1} parent=55 // pred_region
          %423 = dma.done %s416, 128
        $region64: #{tpu_custom_call.1} parent=55 // pred_fallthru
          _
        %s424 = sand.u32 %s31, 1
        %s425 = scalar_lea.sflag [#allocation6], %s424
        %s426 = sand.u32 %s103, 1
        %s427 = smul.addr %s426, 8
        %s428 = scalar_lea.vmem [#allocation7], %s427
        // Predicated region
        $region65: #{tpu_custom_call.1} parent=55 // pred_check
          %p429 = pneg %p116
        $region66: #{tpu_custom_call.1} parent=55 // pred_check_branch
          %431 = sbr.rel (%p429) target = $region68
        $region67: #{tpu_custom_call.1} parent=55 // pred_region
          %432 = dma.done %s425, 128
        $region68: #{tpu_custom_call.1} parent=55 // pred_fallthru
          _
        // Predicated region
        $region69: #{tpu_custom_call.1} parent=55 // pred_check
          %p433 = pneg %p137
        $region70: #{tpu_custom_call.1} parent=55 // pred_check_branch
          %435 = sbr.rel (%p433) target = $region72
        $region71: #{tpu_custom_call.1} parent=55 // pred_region
          %436 = dma.done [#allocation9], 512
        $region72: #{tpu_custom_call.1} parent=55 // pred_fallthru
          _
        // Predicated region
        $region73: #{tpu_custom_call.1} parent=55 // pred_check
          %p437 = pneg %p158
        $region74: #{tpu_custom_call.1} parent=55 // pred_check_branch
          %439 = sbr.rel (%p437) target = $region76
        $region75: #{tpu_custom_call.1} parent=55 // pred_region
          %440 = dma.done [#allocation9], 512
        $region76: #{tpu_custom_call.1} parent=55 // pred_fallthru
          _
        // Predicated region
        $region77: #{tpu_custom_call.1} parent=55 // pred_check
          %p441 = pneg %p179
        $region78: #{tpu_custom_call.1} parent=55 // pred_check_branch
          %443 = sbr.rel (%p441) target = $region80
        $region79: #{tpu_custom_call.1} parent=55 // pred_region
          %444 = dma.done [#allocation12], 512
        $region80: #{tpu_custom_call.1} parent=55 // pred_fallthru
          _
        // Predicated region
        $region81: #{tpu_custom_call.1} parent=55 // pred_check
          %p445 = pneg %p200
        $region82: #{tpu_custom_call.1} parent=55 // pred_check_branch
          %447 = sbr.rel (%p445) target = $region84
        $region83: #{tpu_custom_call.1} parent=55 // pred_region
          %448 = dma.done [#allocation12], 512
        $region84: #{tpu_custom_call.1} parent=55 // pred_fallthru
          _
        %s449 = sand.u32 %s51, 1
        %s450 = scalar_lea.sflag [#allocation3], %s449
        %s451 = sand.u32 %s51, 1
        %s452 = smul.addr %s451, 8
        %s453 = scalar_lea.vmem [#allocation2], %s452
        %p454 = pneg %p64
        %p455 = pneg %p61
        %s456 = sand.u32 %s31, 1
        %s457 = scalar_lea.sflag [#allocation6], %s456
        %s458 = sand.u32 %s77, 1
        %s459 = smul.addr %s458, 8
        %s460 = scalar_lea.vmem [#allocation5], %s459
        %p461 = pneg %p90
        %p462 = pneg %p87
        %s463 = sand.u32 %s31, 1
        %s464 = scalar_lea.sflag [#allocation6], %s463
        %s465 = sand.u32 %s103, 1
        %s466 = smul.addr %s465, 8
        %s467 = scalar_lea.vmem [#allocation7], %s466
        %p468 = pneg %p116
        %p469 = pneg %p113
        %p470 = pneg %p137
        %p471 = pneg %p134
        %p472 = pneg %p158
        %p473 = pneg %p155
        %p474 = pneg %p179
        %p475 = pneg %p176
        %p476 = pneg %p200
        %p477 = pneg %p197
        %p478 = pneg %p221
        %p479 = pneg %p218
        %p480 = pneg %p242
        %p481 = pneg %p239
        %p482 = pneg %p268
        %p483 = pneg %p265
        %s484 = sand.u32 %s255, 1
        %s485 = scalar_lea.sflag [#allocation4], %s484
        %s486 = sand.u32 %s255, 1
        %s487 = smul.addr %s486, 8
        %s488 = scalar_lea.vmem [#allocation14], %s487
        %v489 = vld [vmem:[%s410] sm:$0xff]
        %v490 = vld [vmem:[%s419] sm:$0xff]
        %v491 = vld [vmem:[%s428] sm:$0xff]
        %s492 = smul.u32 %s36, 32
        %s493 = scalar_lea.vmem [#allocation8], %s492
        %v494 = vld [vmem:[%s493] sm:$0xff]
        %v495 = vld [vmem:[%s493 + $0x8] sm:$0xff]
        %v496 = vld [vmem:[%s493 + $0x10] sm:$0xff]
        %v497 = vld [vmem:[%s493 + $0x18] sm:$0xff]
        %s498 = scalar_lea.vmem [#allocation10], %s492
        %v499 = vld [vmem:[%s498] sm:$0xff]
        %v500 = vld [vmem:[%s498 + $0x8] sm:$0xff]
        %v501 = vld [vmem:[%s498 + $0x10] sm:$0xff]
        %v502 = vld [vmem:[%s498 + $0x18] sm:$0xff]
        %s503 = scalar_lea.vmem [#allocation11], %s492
        %v504 = vld [vmem:[%s503] sm:$0xff]
        %v505 = vld [vmem:[%s503 + $0x8] sm:$0xff]
        %v506 = vld [vmem:[%s503 + $0x10] sm:$0xff]
        %v507 = vld [vmem:[%s503 + $0x18] sm:$0xff]
        %s508 = scalar_lea.vmem [#allocation13], %s492
        %v509 = vld [vmem:[%s508] sm:$0xff]
        %v510 = vld [vmem:[%s508 + $0x8] sm:$0xff]
        %v511 = vld [vmem:[%s508 + $0x10] sm:$0xff]
        %v512 = vld [vmem:[%s508 + $0x18] sm:$0xff]
        %s513 = smul.u32 %s36, 4
        %s514 = scalar_lea.vmem %s7, %s513
        %v515 = vld [vmem:[%s514] sm:$0x7]
        %v516 = vlaneseq
        %v517 = vshrl.u32 %v516, 7
        %v518 = vsub.s32 0, %v517
        %v519 = vrot.slane %v515, %v518
        %vm520 = vcmask 261120
        %v522 = vsel %vm520, %v489, 0
        %524 = vmatprep.subr.mxu0 0.0
        %525 = vmatpush1.msra.mxu0 %v494
        %526 = vmatprep.subr.mxu0 0.0
        %527 = vmatpush1.msra.mxu0 %v495
        %528 = vmatprep.subr.mxu0 0.0
        %529 = vmatpush1.msra.mxu0 %v496
        %530 = vmatprep.subr.mxu0 0.0
        %531 = vmatpush1.msra.mxu0 %v497
        %532 = vmatprep.subr.mxu0 0.0
        %533 = vmatpush1.msra.mxu0 0.0
        %534 = vmatprep.subr.mxu0 0.0
        %535 = vmatpush1.msra.mxu0 0.0
        %536 = vmatprep.subr.mxu0 0.0
        %537 = vmatpush1.msra.mxu0 0.0
        %538 = vmatprep.subr.mxu0 0.0
        %539 = vmatpush1.msra.mxu0 0.0
        %540 = vmatprep.subr.mxu0 0.0
        %541 = vmatpush1.msra.mxu0 0.0
        %542 = vmatprep.subr.mxu0 0.0
        %543 = vmatpush1.msra.mxu0 0.0
        %544 = vmatprep.subr.mxu0 0.0
        %545 = vmatpush1.msra.mxu0 0.0
        %546 = vmatprep.subr.mxu0 0.0
        %547 = vmatpush1.msra.mxu0 0.0
        %548 = vmatprep.subr.mxu0 0.0
        %549 = vmatpush1.msra.mxu0 0.0
        %550 = vmatprep.subr.mxu0 0.0
        %551 = vmatpush1.msra.mxu0 0.0
        %552 = vmatprep.subr.mxu0 0.0
        %553 = vmatpush1.msra.mxu0 0.0
        %554 = vmatprep.subr.mxu0 0.0
        %555 = vmatpush1.msra.mxu0 0.0
        %556 = vmatprep.subr.mxu0 0.0
        %557 = vmatpush1.msra.mxu0 0.0
        %558 = vmatprep.subr.mxu0 0.0
        %559 = vmatpush1.msra.mxu0 0.0
        %560 = vmatprep.subr.mxu0 0.0
        %561 = vmatpush1.msra.mxu0 0.0
        %562 = vmatprep.subr.mxu0 0.0
        %563 = vmatpush1.msra.mxu0 0.0
        %564 = vmatprep.subr.mxu0 0.0
        %565 = vmatpush1.msra.mxu0 0.0
        %566 = vmatprep.subr.mxu0 0.0
        %567 = vmatpush1.msra.mxu0 0.0
        %568 = vmatprep.subr.mxu0 0.0
        %569 = vmatpush1.msra.mxu0 0.0
        %570 = vmatprep.subr.mxu0 0.0
        %571 = vmatpush1.msra.mxu0 0.0
        %572 = vmatprep.subr.mxu0 0.0
        %573 = vmatpush1.msra.mxu0 0.0
        %574 = vmatprep.subr.mxu0 0.0
        %575 = vmatpush1.msra.mxu0 0.0
        %576 = vmatprep.subr.mxu0 0.0
        %577 = vmatpush1.msra.mxu0 0.0
        %578 = vmatprep.subr.mxu0 0.0
        %579 = vmatpush1.msra.mxu0 0.0
        %580 = vmatprep.subr.mxu0 0.0
        %581 = vmatpush1.msra.mxu0 0.0
        %582 = vmatprep.subr.mxu0 0.0
        %583 = vmatpush1.msra.mxu0 0.0
        %584 = vmatprep.subr.mxu0 0.0
        %585 = vmatpush1.msra.mxu0 0.0
        %586 = vmatprep.subr.mxu0 0.0
        %587 = vmatpush1.msra.mxu0 0.0
        %588 = vmatprep.mubr.f32.mxu0 0.0
        %589 = vmatmul.mubr.f32.gmra.mrb[0].mxu0 %v522
        %v590 = vpop.f32.mrb[0].mxu0
        %v591 = vadd.f32 %v519, %v590
        %v592 = vpop.f32.mrb[0].mxu0
        %593 = vdwg.mxu0
        %v594 = vmul.f32 %v591, 0.35355338
        %v595 = vlaneseq
        %v596 = vshrl.u32 %v595, 7
        %v597 = vsub.s32 1, %v596
        %v598 = vrot.slane %v515, %v597
        %v600 = vsel %vm520, %v490, 0
        %602 = vmatprep.subr.mxu0 0.0
        %603 = vmatpush1.msra.mxu0 %v499
        %604 = vmatprep.subr.mxu0 0.0
        %605 = vmatpush1.msra.mxu0 %v500
        %606 = vmatprep.subr.mxu0 0.0
        %607 = vmatpush1.msra.mxu0 %v501
        %608 = vmatprep.subr.mxu0 0.0
        %609 = vmatpush1.msra.mxu0 %v502
        %610 = vmatprep.subr.mxu0 0.0
        %611 = vmatpush1.msra.mxu0 0.0
        %612 = vmatprep.subr.mxu0 0.0
        %613 = vmatpush1.msra.mxu0 0.0
        %614 = vmatprep.subr.mxu0 0.0
        %615 = vmatpush1.msra.mxu0 0.0
        %616 = vmatprep.subr.mxu0 0.0
        %617 = vmatpush1.msra.mxu0 0.0
        %618 = vmatprep.subr.mxu0 0.0
        %619 = vmatpush1.msra.mxu0 0.0
        %620 = vmatprep.subr.mxu0 0.0
        %621 = vmatpush1.msra.mxu0 0.0
        %622 = vmatprep.subr.mxu0 0.0
        %623 = vmatpush1.msra.mxu0 0.0
        %624 = vmatprep.subr.mxu0 0.0
        %625 = vmatpush1.msra.mxu0 0.0
        %626 = vmatprep.subr.mxu0 0.0
        %627 = vmatpush1.msra.mxu0 0.0
        %628 = vmatprep.subr.mxu0 0.0
        %629 = vmatpush1.msra.mxu0 0.0
        %630 = vmatprep.subr.mxu0 0.0
        %631 = vmatpush1.msra.mxu0 0.0
        %632 = vmatprep.subr.mxu0 0.0
        %633 = vmatpush1.msra.mxu0 0.0
        %634 = vmatprep.subr.mxu0 0.0
        %635 = vmatpush1.msra.mxu0 0.0
        %636 = vmatprep.subr.mxu0 0.0
        %637 = vmatpush1.msra.mxu0 0.0
        %638 = vmatprep.subr.mxu0 0.0
        %639 = vmatpush1.msra.mxu0 0.0
        %640 = vmatprep.subr.mxu0 0.0
        %641 = vmatpush1.msra.mxu0 0.0
        %642 = vmatprep.subr.mxu0 0.0
        %643 = vmatpush1.msra.mxu0 0.0
        %644 = vmatprep.subr.mxu0 0.0
        %645 = vmatpush1.msra.mxu0 0.0
        %646 = vmatprep.subr.mxu0 0.0
        %647 = vmatpush1.msra.mxu0 0.0
        %648 = vmatprep.subr.mxu0 0.0
        %649 = vmatpush1.msra.mxu0 0.0
        %650 = vmatprep.subr.mxu0 0.0
        %651 = vmatpush1.msra.mxu0 0.0
        %652 = vmatprep.subr.mxu0 0.0
        %653 = vmatpush1.msra.mxu0 0.0
        %654 = vmatprep.subr.mxu0 0.0
        %655 = vmatpush1.msra.mxu0 0.0
        %656 = vmatprep.subr.mxu0 0.0
        %657 = vmatpush1.msra.mxu0 0.0
        %658 = vmatprep.subr.mxu0 0.0
        %659 = vmatpush1.msra.mxu0 0.0
        %660 = vmatprep.subr.mxu0 0.0
        %661 = vmatpush1.msra.mxu0 0.0
        %662 = vmatprep.subr.mxu0 0.0
        %663 = vmatpush1.msra.mxu0 0.0
        %664 = vmatprep.subr.mxu0 0.0
        %665 = vmatpush1.msra.mxu0 0.0
        %666 = vmatprep.mubr.f32.mxu0 0.0
        %667 = vmatmul.mubr.f32.gmra.mrb[0].mxu0 %v600
        %v668 = vpop.f32.mrb[0].mxu0
        %v669 = vadd.f32 %v598, %v668
        %v670 = vpop.f32.mrb[0].mxu0
        %671 = vdwg.mxu0
        %v672 = vlaneseq
        %v673 = vshrl.u32 %v672, 7
        %v674 = vsub.s32 2, %v673
        %v675 = vrot.slane %v515, %v674
        %v677 = vsel %vm520, %v491, 0
        %679 = vmatprep.subr.mxu0 0.0
        %680 = vmatpush1.msra.mxu0 %v504
        %681 = vmatprep.subr.mxu0 0.0
        %682 = vmatpush1.msra.mxu0 %v505
        %683 = vmatprep.subr.mxu0 0.0
        %684 = vmatpush1.msra.mxu0 %v506
        %685 = vmatprep.subr.mxu0 0.0
        %686 = vmatpush1.msra.mxu0 %v507
        %687 = vmatprep.subr.mxu0 0.0
        %688 = vmatpush1.msra.mxu0 0.0
        %689 = vmatprep.subr.mxu0 0.0
        %690 = vmatpush1.msra.mxu0 0.0
        %691 = vmatprep.subr.mxu0 0.0
        %692 = vmatpush1.msra.mxu0 0.0
        %693 = vmatprep.subr.mxu0 0.0
        %694 = vmatpush1.msra.mxu0 0.0
        %695 = vmatprep.subr.mxu0 0.0
        %696 = vmatpush1.msra.mxu0 0.0
        %697 = vmatprep.subr.mxu0 0.0
        %698 = vmatpush1.msra.mxu0 0.0
        %699 = vmatprep.subr.mxu0 0.0
        %700 = vmatpush1.msra.mxu0 0.0
        %701 = vmatprep.subr.mxu0 0.0
        %702 = vmatpush1.msra.mxu0 0.0
        %703 = vmatprep.subr.mxu0 0.0
        %704 = vmatpush1.msra.mxu0 0.0
        %705 = vmatprep.subr.mxu0 0.0
        %706 = vmatpush1.msra.mxu0 0.0
        %707 = vmatprep.subr.mxu0 0.0
        %708 = vmatpush1.msra.mxu0 0.0
        %709 = vmatprep.subr.mxu0 0.0
        %710 = vmatpush1.msra.mxu0 0.0
        %711 = vmatprep.subr.mxu0 0.0
        %712 = vmatpush1.msra.mxu0 0.0
        %713 = vmatprep.subr.mxu0 0.0
        %714 = vmatpush1.msra.mxu0 0.0
        %715 = vmatprep.subr.mxu0 0.0
        %716 = vmatpush1.msra.mxu0 0.0
        %717 = vmatprep.subr.mxu0 0.0
        %718 = vmatpush1.msra.mxu0 0.0
        %719 = vmatprep.subr.mxu0 0.0
        %720 = vmatpush1.msra.mxu0 0.0
        %721 = vmatprep.subr.mxu0 0.0
        %722 = vmatpush1.msra.mxu0 0.0
        %723 = vmatprep.subr.mxu0 0.0
        %724 = vmatpush1.msra.mxu0 0.0
        %725 = vmatprep.subr.mxu0 0.0
        %726 = vmatpush1.msra.mxu0 0.0
        %727 = vmatprep.subr.mxu0 0.0
        %728 = vmatpush1.msra.mxu0 0.0
        %729 = vmatprep.subr.mxu0 0.0
        %730 = vmatpush1.msra.mxu0 0.0
        %731 = vmatprep.subr.mxu0 0.0
        %732 = vmatpush1.msra.mxu0 0.0
        %733 = vmatprep.subr.mxu0 0.0
        %734 = vmatpush1.msra.mxu0 0.0
        %735 = vmatprep.subr.mxu0 0.0
        %736 = vmatpush1.msra.mxu0 0.0
        %737 = vmatprep.subr.mxu0 0.0
        %738 = vmatpush1.msra.mxu0 0.0
        %739 = vmatprep.subr.mxu0 0.0
        %740 = vmatpush1.msra.mxu0 0.0
        %741 = vmatprep.subr.mxu0 0.0
        %742 = vmatpush1.msra.mxu0 0.0
        %743 = vmatprep.mubr.f32.mxu0 0.0
        %744 = vmatmul.mubr.f32.gmra.mrb[0].mxu0 %v677
        %v745 = vpop.f32.mrb[0].mxu0
        %v746 = vadd.f32 %v675, %v745
        %v747 = vpop.f32.mrb[0].mxu0
        %748 = vdwg.mxu0
        %vm749 = vcmask 64512
        %v751 = vsel %vm749, %v594, 0
        %v754 = vsel %vm749, %v669, 0
        %756 = vmatprep.subr.mxu0 0.0
        %757 = vmatpush1.xpose.msra.mxu0 %v754
        %758 = vmatprep.subr.mxu0 0.0
        %759 = vmatpush1.xpose.msra.mxu0 0.0
        %760 = vmatprep.subr.mxu0 0.0
        %761 = vmatpush1.xpose.msra.mxu0 0.0
        %762 = vmatprep.subr.mxu0 0.0
        %763 = vmatpush1.xpose.msra.mxu0 0.0
        %764 = vmatprep.subr.mxu0 0.0
        %765 = vmatpush1.xpose.msra.mxu0 0.0
        %766 = vmatprep.subr.mxu0 0.0
        %767 = vmatpush1.xpose.msra.mxu0 0.0
        %768 = vmatprep.subr.mxu0 0.0
        %769 = vmatpush1.xpose.msra.mxu0 0.0
        %770 = vmatprep.subr.mxu0 0.0
        %771 = vmatpush1.xpose.msra.mxu0 0.0
        %772 = vmatprep.subr.mxu0 0.0
        %773 = vmatpush1.xpose.msra.mxu0 0.0
        %774 = vmatprep.subr.mxu0 0.0
        %775 = vmatpush1.xpose.msra.mxu0 0.0
        %776 = vmatprep.subr.mxu0 0.0
        %777 = vmatpush1.xpose.msra.mxu0 0.0
        %778 = vmatprep.subr.mxu0 0.0
        %779 = vmatpush1.xpose.msra.mxu0 0.0
        %780 = vmatprep.subr.mxu0 0.0
        %781 = vmatpush1.xpose.msra.mxu0 0.0
        %782 = vmatprep.subr.mxu0 0.0
        %783 = vmatpush1.xpose.msra.mxu0 0.0
        %784 = vmatprep.subr.mxu0 0.0
        %785 = vmatpush1.xpose.msra.mxu0 0.0
        %786 = vmatprep.subr.mxu0 0.0
        %787 = vmatpush1.xpose.msra.mxu0 0.0
        %788 = vmatprep.subr.mxu0 0.0
        %789 = vmatpush1.xpose.msra.mxu0 0.0
        %790 = vmatprep.subr.mxu0 0.0
        %791 = vmatpush1.xpose.msra.mxu0 0.0
        %792 = vmatprep.subr.mxu0 0.0
        %793 = vmatpush1.xpose.msra.mxu0 0.0
        %794 = vmatprep.subr.mxu0 0.0
        %795 = vmatpush1.xpose.msra.mxu0 0.0
        %796 = vmatprep.subr.mxu0 0.0
        %797 = vmatpush1.xpose.msra.mxu0 0.0
        %798 = vmatprep.subr.mxu0 0.0
        %799 = vmatpush1.xpose.msra.mxu0 0.0
        %800 = vmatprep.subr.mxu0 0.0
        %801 = vmatpush1.xpose.msra.mxu0 0.0
        %802 = vmatprep.subr.mxu0 0.0
        %803 = vmatpush1.xpose.msra.mxu0 0.0
        %804 = vmatprep.subr.mxu0 0.0
        %805 = vmatpush1.xpose.msra.mxu0 0.0
        %806 = vmatprep.subr.mxu0 0.0
        %807 = vmatpush1.xpose.msra.mxu0 0.0
        %808 = vmatprep.subr.mxu0 0.0
        %809 = vmatpush1.xpose.msra.mxu0 0.0
        %810 = vmatprep.subr.mxu0 0.0
        %811 = vmatpush1.xpose.msra.mxu0 0.0
        %812 = vmatprep.subr.mxu0 0.0
        %813 = vmatpush1.xpose.msra.mxu0 0.0
        %814 = vmatprep.subr.mxu0 0.0
        %815 = vmatpush1.xpose.msra.mxu0 0.0
        %816 = vmatprep.subr.mxu0 0.0
        %817 = vmatpush1.xpose.msra.mxu0 0.0
        %818 = vmatprep.subr.mxu0 0.0
        %819 = vmatpush1.xpose.msra.mxu0 0.0
        %820 = vmatprep.mubr.f32.mxu0 0.0
        %821 = vmatmul.mubr.f32.gmra.mrb[0].mxu0 %v751
        %v822 = vpop.f32.mrb[0].mxu0
        %v823 = vadd.f32 0.0, %v822
        %v824 = vpop.f32.mrb[0].mxu0
        %825 = vdwg.mxu0
        %v826 = vsel %vm749, %v823, -inf
        %827 = vmax.xlane.f32.xlu0 %v826
        %v828 = vpop.xlane.xlu0 %827
        %v829 = vsub.f32 %v823, %v828
        %v830 = vmul.f32 %v829, 1.442695
        %v831 = vpow.pop %v830
        %v832 = vsel %vm749, %v831, 0.0
        %833 = vadd.xlane.f32.xlu0 %v832
        %v834 = vpop.xlane.xlu0 %833
        %v835 = vrcp.pop %v834
        %v836 = vmul.f32 %v831, %v835
        %v838 = vsel %vm749, %v836, 0
        %840 = vmatprep.subr.mxu0 0.0
        %841 = vmatpush1.msra.mxu0 %v746
        %842 = vmatprep.subr.mxu0 0.0
        %843 = vmatpush1.msra.mxu0 0.0
        %844 = vmatprep.subr.mxu0 0.0
        %845 = vmatpush1.msra.mxu0 0.0
        %846 = vmatprep.subr.mxu0 0.0
        %847 = vmatpush1.msra.mxu0 0.0
        %848 = vmatprep.subr.mxu0 0.0
        %849 = vmatpush1.msra.mxu0 0.0
        %850 = vmatprep.subr.mxu0 0.0
        %851 = vmatpush1.msra.mxu0 0.0
        %852 = vmatprep.subr.mxu0 0.0
        %853 = vmatpush1.msra.mxu0 0.0
        %854 = vmatprep.subr.mxu0 0.0
        %855 = vmatpush1.msra.mxu0 0.0
        %856 = vmatprep.subr.mxu0 0.0
        %857 = vmatpush1.msra.mxu0 0.0
        %858 = vmatprep.subr.mxu0 0.0
        %859 = vmatpush1.msra.mxu0 0.0
        %860 = vmatprep.subr.mxu0 0.0
        %861 = vmatpush1.msra.mxu0 0.0
        %862 = vmatprep.subr.mxu0 0.0
        %863 = vmatpush1.msra.mxu0 0.0
        %864 = vmatprep.subr.mxu0 0.0
        %865 = vmatpush1.msra.mxu0 0.0
        %866 = vmatprep.subr.mxu0 0.0
        %867 = vmatpush1.msra.mxu0 0.0
        %868 = vmatprep.subr.mxu0 0.0
        %869 = vmatpush1.msra.mxu0 0.0
        %870 = vmatprep.subr.mxu0 0.0
        %871 = vmatpush1.msra.mxu0 0.0
        %872 = vmatprep.subr.mxu0 0.0
        %873 = vmatpush1.msra.mxu0 0.0
        %874 = vmatprep.subr.mxu0 0.0
        %875 = vmatpush1.msra.mxu0 0.0
        %876 = vmatprep.subr.mxu0 0.0
        %877 = vmatpush1.msra.mxu0 0.0
        %878 = vmatprep.subr.mxu0 0.0
        %879 = vmatpush1.msra.mxu0 0.0
        %880 = vmatprep.subr.mxu0 0.0
        %881 = vmatpush1.msra.mxu0 0.0
        %882 = vmatprep.subr.mxu0 0.0
        %883 = vmatpush1.msra.mxu0 0.0
        %884 = vmatprep.subr.mxu0 0.0
        %885 = vmatpush1.msra.mxu0 0.0
        %886 = vmatprep.subr.mxu0 0.0
        %887 = vmatpush1.msra.mxu0 0.0
        %888 = vmatprep.subr.mxu0 0.0
        %889 = vmatpush1.msra.mxu0 0.0
        %890 = vmatprep.subr.mxu0 0.0
        %891 = vmatpush1.msra.mxu0 0.0
        %892 = vmatprep.subr.mxu0 0.0
        %893 = vmatpush1.msra.mxu0 0.0
        %894 = vmatprep.subr.mxu0 0.0
        %895 = vmatpush1.msra.mxu0 0.0
        %896 = vmatprep.subr.mxu0 0.0
        %897 = vmatpush1.msra.mxu0 0.0
        %898 = vmatprep.subr.mxu0 0.0
        %899 = vmatpush1.msra.mxu0 0.0
        %900 = vmatprep.subr.mxu0 0.0
        %901 = vmatpush1.msra.mxu0 0.0
        %902 = vmatprep.subr.mxu0 0.0
        %903 = vmatpush1.msra.mxu0 0.0
        %904 = vmatprep.mubr.f32.mxu0 0.0
        %905 = vmatmul.mubr.f32.gmra.mrb[0].mxu0 %v838
        %v906 = vpop.f32.mrb[0].mxu0
        %v907 = vadd.f32 0.0, %v906
        %v908 = vpop.f32.mrb[0].mxu0
        %909 = vdwg.mxu0
        %910 = vrot.lane.b32.xlu0 %v594, 120
        %v911 = vpop.permute.xlu0 %910
        %912 = vrot.lane.b32.xlu0 %v669, 120
        %v913 = vpop.permute.xlu0 %912
        %v914 = vsel %vm749, %v911, 0
        %v916 = vsel %vm749, %v913, 0
        %918 = vmatprep.subr.mxu0 0.0
        %919 = vmatpush1.xpose.msra.mxu0 %v916
        %920 = vmatprep.subr.mxu0 0.0
        %921 = vmatpush1.xpose.msra.mxu0 0.0
        %922 = vmatprep.subr.mxu0 0.0
        %923 = vmatpush1.xpose.msra.mxu0 0.0
        %924 = vmatprep.subr.mxu0 0.0
        %925 = vmatpush1.xpose.msra.mxu0 0.0
        %926 = vmatprep.subr.mxu0 0.0
        %927 = vmatpush1.xpose.msra.mxu0 0.0
        %928 = vmatprep.subr.mxu0 0.0
        %929 = vmatpush1.xpose.msra.mxu0 0.0
        %930 = vmatprep.subr.mxu0 0.0
        %931 = vmatpush1.xpose.msra.mxu0 0.0
        %932 = vmatprep.subr.mxu0 0.0
        %933 = vmatpush1.xpose.msra.mxu0 0.0
        %934 = vmatprep.subr.mxu0 0.0
        %935 = vmatpush1.xpose.msra.mxu0 0.0
        %936 = vmatprep.subr.mxu0 0.0
        %937 = vmatpush1.xpose.msra.mxu0 0.0
        %938 = vmatprep.subr.mxu0 0.0
        %939 = vmatpush1.xpose.msra.mxu0 0.0
        %940 = vmatprep.subr.mxu0 0.0
        %941 = vmatpush1.xpose.msra.mxu0 0.0
        %942 = vmatprep.subr.mxu0 0.0
        %943 = vmatpush1.xpose.msra.mxu0 0.0
        %944 = vmatprep.subr.mxu0 0.0
        %945 = vmatpush1.xpose.msra.mxu0 0.0
        %946 = vmatprep.subr.mxu0 0.0
        %947 = vmatpush1.xpose.msra.mxu0 0.0
        %948 = vmatprep.subr.mxu0 0.0
        %949 = vmatpush1.xpose.msra.mxu0 0.0
        %950 = vmatprep.subr.mxu0 0.0
        %951 = vmatpush1.xpose.msra.mxu0 0.0
        %952 = vmatprep.subr.mxu0 0.0
        %953 = vmatpush1.xpose.msra.mxu0 0.0
        %954 = vmatprep.subr.mxu0 0.0
        %955 = vmatpush1.xpose.msra.mxu0 0.0
        %956 = vmatprep.subr.mxu0 0.0
        %957 = vmatpush1.xpose.msra.mxu0 0.0
        %958 = vmatprep.subr.mxu0 0.0
        %959 = vmatpush1.xpose.msra.mxu0 0.0
        %960 = vmatprep.subr.mxu0 0.0
        %961 = vmatpush1.xpose.msra.mxu0 0.0
        %962 = vmatprep.subr.mxu0 0.0
        %963 = vmatpush1.xpose.msra.mxu0 0.0
        %964 = vmatprep.subr.mxu0 0.0
        %965 = vmatpush1.xpose.msra.mxu0 0.0
        %966 = vmatprep.subr.mxu0 0.0
        %967 = vmatpush1.xpose.msra.mxu0 0.0
        %968 = vmatprep.subr.mxu0 0.0
        %969 = vmatpush1.xpose.msra.mxu0 0.0
        %970 = vmatprep.subr.mxu0 0.0
        %971 = vmatpush1.xpose.msra.mxu0 0.0
        %972 = vmatprep.subr.mxu0 0.0
        %973 = vmatpush1.xpose.msra.mxu0 0.0
        %974 = vmatprep.subr.mxu0 0.0
        %975 = vmatpush1.xpose.msra.mxu0 0.0
        %976 = vmatprep.subr.mxu0 0.0
        %977 = vmatpush1.xpose.msra.mxu0 0.0
        %978 = vmatprep.subr.mxu0 0.0
        %979 = vmatpush1.xpose.msra.mxu0 0.0
        %980 = vmatprep.subr.mxu0 0.0
        %981 = vmatpush1.xpose.msra.mxu0 0.0
        %982 = vmatprep.mubr.f32.mxu0 0.0
        %983 = vmatmul.mubr.f32.gmra.mrb[0].mxu0 %v914
        %v984 = vpop.f32.mrb[0].mxu0
        %v985 = vadd.f32 0.0, %v984
        %v986 = vpop.f32.mrb[0].mxu0
        %987 = vdwg.mxu0
        %v988 = vsel %vm749, %v985, -inf
        %989 = vmax.xlane.f32.xlu0 %v988
        %v990 = vpop.xlane.xlu0 %989
        %v991 = vsub.f32 %v985, %v990
        %v992 = vmul.f32 %v991, 1.442695
        %v993 = vpow.pop %v992
        %v994 = vsel %vm749, %v993, 0.0
        %995 = vadd.xlane.f32.xlu0 %v994
        %v996 = vpop.xlane.xlu0 %995
        %v997 = vrcp.pop %v996
        %v998 = vmul.f32 %v993, %v997
        %1000 = vrot.lane.b32.xlu0 %v746, 120
        %v1001 = vpop.permute.xlu0 %1000
        %v1004 = vsel %vm749, %v998, 0
        %1006 = vmatprep.subr.mxu0 0.0
        %1007 = vmatpush1.msra.mxu0 %v1001
        %1008 = vmatprep.subr.mxu0 0.0
        %1009 = vmatpush1.msra.mxu0 0.0
        %1010 = vmatprep.subr.mxu0 0.0
        %1011 = vmatpush1.msra.mxu0 0.0
        %1012 = vmatprep.subr.mxu0 0.0
        %1013 = vmatpush1.msra.mxu0 0.0
        %1014 = vmatprep.subr.mxu0 0.0
        %1015 = vmatpush1.msra.mxu0 0.0
        %1016 = vmatprep.subr.mxu0 0.0
        %1017 = vmatpush1.msra.mxu0 0.0
        %1018 = vmatprep.subr.mxu0 0.0
        %1019 = vmatpush1.msra.mxu0 0.0
        %1020 = vmatprep.subr.mxu0 0.0
        %1021 = vmatpush1.msra.mxu0 0.0
        %1022 = vmatprep.subr.mxu0 0.0
        %1023 = vmatpush1.msra.mxu0 0.0
        %1024 = vmatprep.subr.mxu0 0.0
        %1025 = vmatpush1.msra.mxu0 0.0
        %1026 = vmatprep.subr.mxu0 0.0
        %1027 = vmatpush1.msra.mxu0 0.0
        %1028 = vmatprep.subr.mxu0 0.0
        %1029 = vmatpush1.msra.mxu0 0.0
        %1030 = vmatprep.subr.mxu0 0.0
        %1031 = vmatpush1.msra.mxu0 0.0
        %1032 = vmatprep.subr.mxu0 0.0
        %1033 = vmatpush1.msra.mxu0 0.0
        %1034 = vmatprep.subr.mxu0 0.0
        %1035 = vmatpush1.msra.mxu0 0.0
        %1036 = vmatprep.subr.mxu0 0.0
        %1037 = vmatpush1.msra.mxu0 0.0
        %1038 = vmatprep.subr.mxu0 0.0
        %1039 = vmatpush1.msra.mxu0 0.0
        %1040 = vmatprep.subr.mxu0 0.0
        %1041 = vmatpush1.msra.mxu0 0.0
        %1042 = vmatprep.subr.mxu0 0.0
        %1043 = vmatpush1.msra.mxu0 0.0
        %1044 = vmatprep.subr.mxu0 0.0
        %1045 = vmatpush1.msra.mxu0 0.0
        %1046 = vmatprep.subr.mxu0 0.0
        %1047 = vmatpush1.msra.mxu0 0.0
        %1048 = vmatprep.subr.mxu0 0.0
        %1049 = vmatpush1.msra.mxu0 0.0
        %1050 = vmatprep.subr.mxu0 0.0
        %1051 = vmatpush1.msra.mxu0 0.0
        %1052 = vmatprep.subr.mxu0 0.0
        %1053 = vmatpush1.msra.mxu0 0.0
        %1054 = vmatprep.subr.mxu0 0.0
        %1055 = vmatpush1.msra.mxu0 0.0
        %1056 = vmatprep.subr.mxu0 0.0
        %1057 = vmatpush1.msra.mxu0 0.0
        %1058 = vmatprep.subr.mxu0 0.0
        %1059 = vmatpush1.msra.mxu0 0.0
        %1060 = vmatprep.subr.mxu0 0.0
        %1061 = vmatpush1.msra.mxu0 0.0
        %1062 = vmatprep.subr.mxu0 0.0
        %1063 = vmatpush1.msra.mxu0 0.0
        %1064 = vmatprep.subr.mxu0 0.0
        %1065 = vmatpush1.msra.mxu0 0.0
        %1066 = vmatprep.subr.mxu0 0.0
        %1067 = vmatpush1.msra.mxu0 0.0
        %1068 = vmatprep.subr.mxu0 0.0
        %1069 = vmatpush1.msra.mxu0 0.0
        %1070 = vmatprep.mubr.f32.mxu0 0.0
        %1071 = vmatmul.mubr.f32.gmra.mrb[0].mxu0 %v1004
        %v1072 = vpop.f32.mrb[0].mxu0
        %v1073 = vadd.f32 0.0, %v1072
        %v1074 = vpop.f32.mrb[0].mxu0
        %1075 = vdwg.mxu0
        %1076 = vrot.lane.b32.xlu0 %v594, 112
        %v1077 = vpop.permute.xlu0 %1076
        %1078 = vrot.lane.b32.xlu0 %v669, 112
        %v1079 = vpop.permute.xlu0 %1078
        %v1080 = vsel %vm749, %v1077, 0
        %v1082 = vsel %vm749, %v1079, 0
        %1084 = vmatprep.subr.mxu0 0.0
        %1085 = vmatpush1.xpose.msra.mxu0 %v1082
        %1086 = vmatprep.subr.mxu0 0.0
        %1087 = vmatpush1.xpose.msra.mxu0 0.0
        %1088 = vmatprep.subr.mxu0 0.0
        %1089 = vmatpush1.xpose.msra.mxu0 0.0
        %1090 = vmatprep.subr.mxu0 0.0
        %1091 = vmatpush1.xpose.msra.mxu0 0.0
        %1092 = vmatprep.subr.mxu0 0.0
        %1093 = vmatpush1.xpose.msra.mxu0 0.0
        %1094 = vmatprep.subr.mxu0 0.0
        %1095 = vmatpush1.xpose.msra.mxu0 0.0
        %1096 = vmatprep.subr.mxu0 0.0
        %1097 = vmatpush1.xpose.msra.mxu0 0.0
        %1098 = vmatprep.subr.mxu0 0.0
        %1099 = vmatpush1.xpose.msra.mxu0 0.0
        %1100 = vmatprep.subr.mxu0 0.0
        %1101 = vmatpush1.xpose.msra.mxu0 0.0
        %1102 = vmatprep.subr.mxu0 0.0
        %1103 = vmatpush1.xpose.msra.mxu0 0.0
        %1104 = vmatprep.subr.mxu0 0.0
        %1105 = vmatpush1.xpose.msra.mxu0 0.0
        %1106 = vmatprep.subr.mxu0 0.0
        %1107 = vmatpush1.xpose.msra.mxu0 0.0
        %1108 = vmatprep.subr.mxu0 0.0
        %1109 = vmatpush1.xpose.msra.mxu0 0.0
        %1110 = vmatprep.subr.mxu0 0.0
        %1111 = vmatpush1.xpose.msra.mxu0 0.0
        %1112 = vmatprep.subr.mxu0 0.0
        %1113 = vmatpush1.xpose.msra.mxu0 0.0
        %1114 = vmatprep.subr.mxu0 0.0
        %1115 = vmatpush1.xpose.msra.mxu0 0.0
        %1116 = vmatprep.subr.mxu0 0.0
        %1117 = vmatpush1.xpose.msra.mxu0 0.0
        %1118 = vmatprep.subr.mxu0 0.0
        %1119 = vmatpush1.xpose.msra.mxu0 0.0
        %1120 = vmatprep.subr.mxu0 0.0
        %1121 = vmatpush1.xpose.msra.mxu0 0.0
        %1122 = vmatprep.subr.mxu0 0.0
        %1123 = vmatpush1.xpose.msra.mxu0 0.0
        %1124 = vmatprep.subr.mxu0 0.0
        %1125 = vmatpush1.xpose.msra.mxu0 0.0
        %1126 = vmatprep.subr.mxu0 0.0
        %1127 = vmatpush1.xpose.msra.mxu0 0.0
        %1128 = vmatprep.subr.mxu0 0.0
        %1129 = vmatpush1.xpose.msra.mxu0 0.0
        %1130 = vmatprep.subr.mxu0 0.0
        %1131 = vmatpush1.xpose.msra.mxu0 0.0
        %1132 = vmatprep.subr.mxu0 0.0
        %1133 = vmatpush1.xpose.msra.mxu0 0.0
        %1134 = vmatprep.subr.mxu0 0.0
        %1135 = vmatpush1.xpose.msra.mxu0 0.0
        %1136 = vmatprep.subr.mxu0 0.0
        %1137 = vmatpush1.xpose.msra.mxu0 0.0
        %1138 = vmatprep.subr.mxu0 0.0
        %1139 = vmatpush1.xpose.msra.mxu0 0.0
        %1140 = vmatprep.subr.mxu0 0.0
        %1141 = vmatpush1.xpose.msra.mxu0 0.0
        %1142 = vmatprep.subr.mxu0 0.0
        %1143 = vmatpush1.xpose.msra.mxu0 0.0
        %1144 = vmatprep.subr.mxu0 0.0
        %1145 = vmatpush1.xpose.msra.mxu0 0.0
        %1146 = vmatprep.subr.mxu0 0.0
        %1147 = vmatpush1.xpose.msra.mxu0 0.0
        %1148 = vmatprep.mubr.f32.mxu0 0.0
        %1149 = vmatmul.mubr.f32.gmra.mrb[0].mxu0 %v1080
        %v1150 = vpop.f32.mrb[0].mxu0
        %v1151 = vadd.f32 0.0, %v1150
        %v1152 = vpop.f32.mrb[0].mxu0
        %1153 = vdwg.mxu0
        %v1154 = vsel %vm749, %v1151, -inf
        %1155 = vmax.xlane.f32.xlu0 %v1154
        %v1156 = vpop.xlane.xlu0 %1155
        %v1157 = vsub.f32 %v1151, %v1156
        %v1158 = vmul.f32 %v1157, 1.442695
        %v1159 = vpow.pop %v1158
        %v1160 = vsel %vm749, %v1159, 0.0
        %1161 = vadd.xlane.f32.xlu0 %v1160
        %v1162 = vpop.xlane.xlu0 %1161
        %v1163 = vrcp.pop %v1162
        %v1164 = vmul.f32 %v1159, %v1163
        %1165 = vrot.lane.b32.xlu0 %v746, 112
        %v1166 = vpop.permute.xlu0 %1165
        %v1169 = vsel %vm749, %v1164, 0
        %1171 = vmatprep.subr.mxu0 0.0
        %1172 = vmatpush1.msra.mxu0 %v1166
        %1173 = vmatprep.subr.mxu0 0.0
        %1174 = vmatpush1.msra.mxu0 0.0
        %1175 = vmatprep.subr.mxu0 0.0
        %1176 = vmatpush1.msra.mxu0 0.0
        %1177 = vmatprep.subr.mxu0 0.0
        %1178 = vmatpush1.msra.mxu0 0.0
        %1179 = vmatprep.subr.mxu0 0.0
        %1180 = vmatpush1.msra.mxu0 0.0
        %1181 = vmatprep.subr.mxu0 0.0
        %1182 = vmatpush1.msra.mxu0 0.0
        %1183 = vmatprep.subr.mxu0 0.0
        %1184 = vmatpush1.msra.mxu0 0.0
        %1185 = vmatprep.subr.mxu0 0.0
        %1186 = vmatpush1.msra.mxu0 0.0
        %1187 = vmatprep.subr.mxu0 0.0
        %1188 = vmatpush1.msra.mxu0 0.0
        %1189 = vmatprep.subr.mxu0 0.0
        %1190 = vmatpush1.msra.mxu0 0.0
        %1191 = vmatprep.subr.mxu0 0.0
        %1192 = vmatpush1.msra.mxu0 0.0
        %1193 = vmatprep.subr.mxu0 0.0
        %1194 = vmatpush1.msra.mxu0 0.0
        %1195 = vmatprep.subr.mxu0 0.0
        %1196 = vmatpush1.msra.mxu0 0.0
        %1197 = vmatprep.subr.mxu0 0.0
        %1198 = vmatpush1.msra.mxu0 0.0
        %1199 = vmatprep.subr.mxu0 0.0
        %1200 = vmatpush1.msra.mxu0 0.0
        %1201 = vmatprep.subr.mxu0 0.0
        %1202 = vmatpush1.msra.mxu0 0.0
        %1203 = vmatprep.subr.mxu0 0.0
        %1204 = vmatpush1.msra.mxu0 0.0
        %1205 = vmatprep.subr.mxu0 0.0
        %1206 = vmatpush1.msra.mxu0 0.0
        %1207 = vmatprep.subr.mxu0 0.0
        %1208 = vmatpush1.msra.mxu0 0.0
        %1209 = vmatprep.subr.mxu0 0.0
        %1210 = vmatpush1.msra.mxu0 0.0
        %1211 = vmatprep.subr.mxu0 0.0
        %1212 = vmatpush1.msra.mxu0 0.0
        %1213 = vmatprep.subr.mxu0 0.0
        %1214 = vmatpush1.msra.mxu0 0.0
        %1215 = vmatprep.subr.mxu0 0.0
        %1216 = vmatpush1.msra.mxu0 0.0
        %1217 = vmatprep.subr.mxu0 0.0
        %1218 = vmatpush1.msra.mxu0 0.0
        %1219 = vmatprep.subr.mxu0 0.0
        %1220 = vmatpush1.msra.mxu0 0.0
        %1221 = vmatprep.subr.mxu0 0.0
        %1222 = vmatpush1.msra.mxu0 0.0
        %1223 = vmatprep.subr.mxu0 0.0
        %1224 = vmatpush1.msra.mxu0 0.0
        %1225 = vmatprep.subr.mxu0 0.0
        %1226 = vmatpush1.msra.mxu0 0.0
        %1227 = vmatprep.subr.mxu0 0.0
        %1228 = vmatpush1.msra.mxu0 0.0
        %1229 = vmatprep.subr.mxu0 0.0
        %1230 = vmatpush1.msra.mxu0 0.0
        %1231 = vmatprep.subr.mxu0 0.0
        %1232 = vmatpush1.msra.mxu0 0.0
        %1233 = vmatprep.subr.mxu0 0.0
        %1234 = vmatpush1.msra.mxu0 0.0
        %1235 = vmatprep.mubr.f32.mxu0 0.0
        %1236 = vmatmul.mubr.f32.gmra.mrb[0].mxu0 %v1169
        %v1237 = vpop.f32.mrb[0].mxu0
        %v1238 = vadd.f32 0.0, %v1237
        %v1239 = vpop.f32.mrb[0].mxu0
        %1240 = vdwg.mxu0
        %1241 = vrot.lane.b32.xlu0 %v594, 104
        %v1242 = vpop.permute.xlu0 %1241
        %1243 = vrot.lane.b32.xlu0 %v669, 104
        %v1244 = vpop.permute.xlu0 %1243
        %v1245 = vsel %vm749, %v1242, 0
        %v1247 = vsel %vm749, %v1244, 0
        %1249 = vmatprep.subr.mxu0 0.0
        %1250 = vmatpush1.xpose.msra.mxu0 %v1247
        %1251 = vmatprep.subr.mxu0 0.0
        %1252 = vmatpush1.xpose.msra.mxu0 0.0
        %1253 = vmatprep.subr.mxu0 0.0
        %1254 = vmatpush1.xpose.msra.mxu0 0.0
        %1255 = vmatprep.subr.mxu0 0.0
        %1256 = vmatpush1.xpose.msra.mxu0 0.0
        %1257 = vmatprep.subr.mxu0 0.0
        %1258 = vmatpush1.xpose.msra.mxu0 0.0
        %1259 = vmatprep.subr.mxu0 0.0
        %1260 = vmatpush1.xpose.msra.mxu0 0.0
        %1261 = vmatprep.subr.mxu0 0.0
        %1262 = vmatpush1.xpose.msra.mxu0 0.0
        %1263 = vmatprep.subr.mxu0 0.0
        %1264 = vmatpush1.xpose.msra.mxu0 0.0
        %1265 = vmatprep.subr.mxu0 0.0
        %1266 = vmatpush1.xpose.msra.mxu0 0.0
        %1267 = vmatprep.subr.mxu0 0.0
        %1268 = vmatpush1.xpose.msra.mxu0 0.0
        %1269 = vmatprep.subr.mxu0 0.0
        %1270 = vmatpush1.xpose.msra.mxu0 0.0
        %1271 = vmatprep.subr.mxu0 0.0
        %1272 = vmatpush1.xpose.msra.mxu0 0.0
        %1273 = vmatprep.subr.mxu0 0.0
        %1274 = vmatpush1.xpose.msra.mxu0 0.0
        %1275 = vmatprep.subr.mxu0 0.0
        %1276 = vmatpush1.xpose.msra.mxu0 0.0
        %1277 = vmatprep.subr.mxu0 0.0
        %1278 = vmatpush1.xpose.msra.mxu0 0.0
        %1279 = vmatprep.subr.mxu0 0.0
        %1280 = vmatpush1.xpose.msra.mxu0 0.0
        %1281 = vmatprep.subr.mxu0 0.0
        %1282 = vmatpush1.xpose.msra.mxu0 0.0
        %1283 = vmatprep.subr.mxu0 0.0
        %1284 = vmatpush1.xpose.msra.mxu0 0.0
        %1285 = vmatprep.subr.mxu0 0.0
        %1286 = vmatpush1.xpose.msra.mxu0 0.0
        %1287 = vmatprep.subr.mxu0 0.0
        %1288 = vmatpush1.xpose.msra.mxu0 0.0
        %1289 = vmatprep.subr.mxu0 0.0
        %1290 = vmatpush1.xpose.msra.mxu0 0.0
        %1291 = vmatprep.subr.mxu0 0.0
        %1292 = vmatpush1.xpose.msra.mxu0 0.0
        %1293 = vmatprep.subr.mxu0 0.0
        %1294 = vmatpush1.xpose.msra.mxu0 0.0
        %1295 = vmatprep.subr.mxu0 0.0
        %1296 = vmatpush1.xpose.msra.mxu0 0.0
        %1297 = vmatprep.subr.mxu0 0.0
        %1298 = vmatpush1.xpose.msra.mxu0 0.0
        %1299 = vmatprep.subr.mxu0 0.0
        %1300 = vmatpush1.xpose.msra.mxu0 0.0
        %1301 = vmatprep.subr.mxu0 0.0
        %1302 = vmatpush1.xpose.msra.mxu0 0.0
        %1303 = vmatprep.subr.mxu0 0.0
        %1304 = vmatpush1.xpose.msra.mxu0 0.0
        %1305 = vmatprep.subr.mxu0 0.0
        %1306 = vmatpush1.xpose.msra.mxu0 0.0
        %1307 = vmatprep.subr.mxu0 0.0
        %1308 = vmatpush1.xpose.msra.mxu0 0.0
        %1309 = vmatprep.subr.mxu0 0.0
        %1310 = vmatpush1.xpose.msra.mxu0 0.0
        %1311 = vmatprep.subr.mxu0 0.0
        %1312 = vmatpush1.xpose.msra.mxu0 0.0
        %1313 = vmatprep.mubr.f32.mxu0 0.0
        %1314 = vmatmul.mubr.f32.gmra.mrb[0].mxu0 %v1245
        %v1315 = vpop.f32.mrb[0].mxu0
        %v1316 = vadd.f32 0.0, %v1315
        %v1317 = vpop.f32.mrb[0].mxu0
        %1318 = vdwg.mxu0
        %v1319 = vsel %vm749, %v1316, -inf
        %1320 = vmax.xlane.f32.xlu0 %v1319
        %v1321 = vpop.xlane.xlu0 %1320
        %v1322 = vsub.f32 %v1316, %v1321
        %v1323 = vmul.f32 %v1322, 1.442695
        %v1324 = vpow.pop %v1323
        %v1325 = vsel %vm749, %v1324, 0.0
        %1326 = vadd.xlane.f32.xlu0 %v1325
        %v1327 = vpop.xlane.xlu0 %1326
        %v1328 = vrcp.pop %v1327
        %v1329 = vmul.f32 %v1324, %v1328
        %1330 = vrot.lane.b32.xlu0 %v746, 104
        %v1331 = vpop.permute.xlu0 %1330
        %v1334 = vsel %vm749, %v1329, 0
        %1336 = vmatprep.subr.mxu0 0.0
        %1337 = vmatpush1.msra.mxu0 %v1331
        %1338 = vmatprep.subr.mxu0 0.0
        %1339 = vmatpush1.msra.mxu0 0.0
        %1340 = vmatprep.subr.mxu0 0.0
        %1341 = vmatpush1.msra.mxu0 0.0
        %1342 = vmatprep.subr.mxu0 0.0
        %1343 = vmatpush1.msra.mxu0 0.0
        %1344 = vmatprep.subr.mxu0 0.0
        %1345 = vmatpush1.msra.mxu0 0.0
        %1346 = vmatprep.subr.mxu0 0.0
        %1347 = vmatpush1.msra.mxu0 0.0
        %1348 = vmatprep.subr.mxu0 0.0
        %1349 = vmatpush1.msra.mxu0 0.0
        %1350 = vmatprep.subr.mxu0 0.0
        %1351 = vmatpush1.msra.mxu0 0.0
        %1352 = vmatprep.subr.mxu0 0.0
        %1353 = vmatpush1.msra.mxu0 0.0
        %1354 = vmatprep.subr.mxu0 0.0
        %1355 = vmatpush1.msra.mxu0 0.0
        %1356 = vmatprep.subr.mxu0 0.0
        %1357 = vmatpush1.msra.mxu0 0.0
        %1358 = vmatprep.subr.mxu0 0.0
        %1359 = vmatpush1.msra.mxu0 0.0
        %1360 = vmatprep.subr.mxu0 0.0
        %1361 = vmatpush1.msra.mxu0 0.0
        %1362 = vmatprep.subr.mxu0 0.0
        %1363 = vmatpush1.msra.mxu0 0.0
        %1364 = vmatprep.subr.mxu0 0.0
        %1365 = vmatpush1.msra.mxu0 0.0
        %1366 = vmatprep.subr.mxu0 0.0
        %1367 = vmatpush1.msra.mxu0 0.0
        %1368 = vmatprep.subr.mxu0 0.0
        %1369 = vmatpush1.msra.mxu0 0.0
        %1370 = vmatprep.subr.mxu0 0.0
        %1371 = vmatpush1.msra.mxu0 0.0
        %1372 = vmatprep.subr.mxu0 0.0
        %1373 = vmatpush1.msra.mxu0 0.0
        %1374 = vmatprep.subr.mxu0 0.0
        %1375 = vmatpush1.msra.mxu0 0.0
        %1376 = vmatprep.subr.mxu0 0.0
        %1377 = vmatpush1.msra.mxu0 0.0
        %1378 = vmatprep.subr.mxu0 0.0
        %1379 = vmatpush1.msra.mxu0 0.0
        %1380 = vmatprep.subr.mxu0 0.0
        %1381 = vmatpush1.msra.mxu0 0.0
        %1382 = vmatprep.subr.mxu0 0.0
        %1383 = vmatpush1.msra.mxu0 0.0
        %1384 = vmatprep.subr.mxu0 0.0
        %1385 = vmatpush1.msra.mxu0 0.0
        %1386 = vmatprep.subr.mxu0 0.0
        %1387 = vmatpush1.msra.mxu0 0.0
        %1388 = vmatprep.subr.mxu0 0.0
        %1389 = vmatpush1.msra.mxu0 0.0
        %1390 = vmatprep.subr.mxu0 0.0
        %1391 = vmatpush1.msra.mxu0 0.0
        %1392 = vmatprep.subr.mxu0 0.0
        %1393 = vmatpush1.msra.mxu0 0.0
        %1394 = vmatprep.subr.mxu0 0.0
        %1395 = vmatpush1.msra.mxu0 0.0
        %1396 = vmatprep.subr.mxu0 0.0
        %1397 = vmatpush1.msra.mxu0 0.0
        %1398 = vmatprep.subr.mxu0 0.0
        %1399 = vmatpush1.msra.mxu0 0.0
        %1400 = vmatprep.mubr.f32.mxu0 0.0
        %1401 = vmatmul.mubr.f32.gmra.mrb[0].mxu0 %v1334
        %v1402 = vpop.f32.mrb[0].mxu0
        %v1403 = vadd.f32 0.0, %v1402
        %v1404 = vpop.f32.mrb[0].mxu0
        %1405 = vdwg.mxu0
        %1407 = vrot.lane.b32.xlu0 %v1073, 8
        %v1408 = vpop.permute.xlu0 %1407
        %1411 = vrot.lane.b32.xlu0 %v1238, 16
        %v1412 = vpop.permute.xlu0 %1411
        %1415 = vrot.lane.b32.xlu0 %v1403, 24
        %v1416 = vpop.permute.xlu0 %1415
        %v1418 = vsel %vm749, %v907, %v1408
        %vm1419 = vcmask 130048
        %v1420 = vsel %vm1419, %v1418, %v1412
        %vm1421 = vcmask 195584
        %v1422 = vsel %vm1421, %v1420, %v1416
        %v1424 = vsel %vm520, %v1422, 0
        %1426 = vmatprep.subr.mxu0 0.0
        %1427 = vmatpush1.msra.mxu0 %v509
        %1428 = vmatprep.subr.mxu0 0.0
        %1429 = vmatpush1.msra.mxu0 %v510
        %1430 = vmatprep.subr.mxu0 0.0
        %1431 = vmatpush1.msra.mxu0 %v511
        %1432 = vmatprep.subr.mxu0 0.0
        %1433 = vmatpush1.msra.mxu0 %v512
        %1434 = vmatprep.subr.mxu0 0.0
        %1435 = vmatpush1.msra.mxu0 0.0
        %1436 = vmatprep.subr.mxu0 0.0
        %1437 = vmatpush1.msra.mxu0 0.0
        %1438 = vmatprep.subr.mxu0 0.0
        %1439 = vmatpush1.msra.mxu0 0.0
        %1440 = vmatprep.subr.mxu0 0.0
        %1441 = vmatpush1.msra.mxu0 0.0
        %1442 = vmatprep.subr.mxu0 0.0
        %1443 = vmatpush1.msra.mxu0 0.0
        %1444 = vmatprep.subr.mxu0 0.0
        %1445 = vmatpush1.msra.mxu0 0.0
        %1446 = vmatprep.subr.mxu0 0.0
        %1447 = vmatpush1.msra.mxu0 0.0
        %1448 = vmatprep.subr.mxu0 0.0
        %1449 = vmatpush1.msra.mxu0 0.0
        %1450 = vmatprep.subr.mxu0 0.0
        %1451 = vmatpush1.msra.mxu0 0.0
        %1452 = vmatprep.subr.mxu0 0.0
        %1453 = vmatpush1.msra.mxu0 0.0
        %1454 = vmatprep.subr.mxu0 0.0
        %1455 = vmatpush1.msra.mxu0 0.0
        %1456 = vmatprep.subr.mxu0 0.0
        %1457 = vmatpush1.msra.mxu0 0.0
        %1458 = vmatprep.subr.mxu0 0.0
        %1459 = vmatpush1.msra.mxu0 0.0
        %1460 = vmatprep.subr.mxu0 0.0
        %1461 = vmatpush1.msra.mxu0 0.0
        %1462 = vmatprep.subr.mxu0 0.0
        %1463 = vmatpush1.msra.mxu0 0.0
        %1464 = vmatprep.subr.mxu0 0.0
        %1465 = vmatpush1.msra.mxu0 0.0
        %1466 = vmatprep.subr.mxu0 0.0
        %1467 = vmatpush1.msra.mxu0 0.0
        %1468 = vmatprep.subr.mxu0 0.0
        %1469 = vmatpush1.msra.mxu0 0.0
        %1470 = vmatprep.subr.mxu0 0.0
        %1471 = vmatpush1.msra.mxu0 0.0
        %1472 = vmatprep.subr.mxu0 0.0
        %1473 = vmatpush1.msra.mxu0 0.0
        %1474 = vmatprep.subr.mxu0 0.0
        %1475 = vmatpush1.msra.mxu0 0.0
        %1476 = vmatprep.subr.mxu0 0.0
        %1477 = vmatpush1.msra.mxu0 0.0
        %1478 = vmatprep.subr.mxu0 0.0
        %1479 = vmatpush1.msra.mxu0 0.0
        %1480 = vmatprep.subr.mxu0 0.0
        %1481 = vmatpush1.msra.mxu0 0.0
        %1482 = vmatprep.subr.mxu0 0.0
        %1483 = vmatpush1.msra.mxu0 0.0
        %1484 = vmatprep.subr.mxu0 0.0
        %1485 = vmatpush1.msra.mxu0 0.0
        %1486 = vmatprep.subr.mxu0 0.0
        %1487 = vmatpush1.msra.mxu0 0.0
        %1488 = vmatprep.subr.mxu0 0.0
        %1489 = vmatpush1.msra.mxu0 0.0
        %1490 = vmatprep.mubr.f32.mxu0 0.0
        %1491 = vmatmul.mubr.f32.gmra.mrb[0].mxu0 %v1424
        %v1492 = vpop.f32.mrb[0].mxu0
        %v1493 = vadd.f32 0.0, %v1492
        %v1494 = vpop.f32.mrb[0].mxu0
        %1495 = vdwg.mxu0
        %p1496 = scmp.eq.s32.totalorder %s36, 0
        // Predicated region
        $region85: #{tpu_custom_call.1} parent=55 // pred_check
          %p1497 = pneg %p1496
        $region86: #{tpu_custom_call.1} parent=55 // pred_check_branch
          %1499 = sbr.rel (%p1497) target = $region88
        $region87: #{tpu_custom_call.1} parent=55 // pred_region
          %v1500 = vld [vmem:[%s8] sm:$0x1]
          %v1502 = vlaneseq
          %v1503 = vshrl.u32 %v1502, 7
          %v1504 = vsub.s32 0, %v1503
          %v1505 = vrot.slane %v1500, %v1504
          %v1507 = vadd.f32 %v1493, %v1505
          %1508 = vst.msk [vmem:[%s488] sm:$0xff] %vm520, %v1507
        $region88: #{tpu_custom_call.1} parent=55 // pred_fallthru
          _
        %p1509 = scmp.ne.s32.totalorder %s36, 0
        // Predicated region
        $region89: #{tpu_custom_call.1} parent=55 // pred_check
          %p1510 = pneg %p1509
        $region90: #{tpu_custom_call.1} parent=55 // pred_check_branch
          %1512 = sbr.rel (%p1510) target = $region92
        $region91: #{tpu_custom_call.1} parent=55 // pred_region
          %v1513 = vld [vmem:[%s488] sm:$0xff]
          %v1514 = vadd.f32 %v1513, %v1493
          %1515 = vst.msk [vmem:[%s488] sm:$0xff] %vm520, %v1514
        $region92: #{tpu_custom_call.1} parent=55 // pred_fallthru
          _
        %s1516 = sand.u32 %s255, 1
        %s1517 = scalar_lea.sflag [#allocation4], %s1516
        %s1518 = sand.u32 %s255, 1
        %s1519 = smul.addr %s1518, 8
        %s1520 = scalar_lea.vmem [#allocation14], %s1519
        // Predicated region
        $region93: #{tpu_custom_call.1} parent=55 // pred_check
          %p1521 = pneg %p265
        $region94: #{tpu_custom_call.1} parent=55 // pred_check_branch
          %1523 = sbr.rel (%p1521) target = $region96
        $region95: #{tpu_custom_call.1} parent=55 // pred_region
          %s1525 = ssub.s32 128, 128
          %1526 = vsyncadd %s1517, %s1525
          %s1527 = smul.addr %s35, 128
          %s1528 = scalar_lea.hbm %s9, %s1527
          %s1530 = sshll.u32 %s1520, 4
          %s1531 = int_to_ptr.vmem [resolvable:$true] %s1530
          %1533 = dma.vmem_to_hbm [thread:$0]  %s1531, 128, %s1528, %s1517
        $region96: #{tpu_custom_call.1} parent=55 // pred_fallthru
          _
      $region56: #{tpu_custom_call.1} parent=5 // pred_fallthru
        _
      %p1534 = scmp.le.s32.totalorder 2, %s26
      // Predicated region
      $region97: #{tpu_custom_call.1} parent=5 // pred_check
        %p1535 = pneg %p1534
      $region98: #{tpu_custom_call.1} parent=5 // pred_check_branch
        %1537 = sbr.rel (%p1535) target = $region100
      $region99: #{tpu_custom_call.1} parent=5 // pred_region
        %s1538 = ssub.s32 %s26, 2
        // Predicated region
        $region101: #{tpu_custom_call.1} parent=99 // pred_check
          %p1539 = pneg %p271
        $region102: #{tpu_custom_call.1} parent=99 // pred_check_branch
          %1541 = sbr.rel (%p1539) target = $region104
        $region103: #{tpu_custom_call.1} parent=99 // pred_region
          %s1542 = sand.u32 %s256, 1
          %s1543 = scalar_lea.sflag [#allocation4], %s1542
          %s1544 = sand.u32 %s256, 1
          %s1545 = smul.addr %s1544, 8
          %s1546 = scalar_lea.vmem [#allocation14], %s1545
          %1547 = dma.done %s1543, 128
        $region104: #{tpu_custom_call.1} parent=99 // pred_fallthru
          _
      $region100: #{tpu_custom_call.1} parent=5 // pred_fallthru
        _
    $region6: #{tpu_custom_call.1} parent=1 // loop_footer
      %s30 = sadd.s32 1, %s26
    $region7: #{tpu_custom_call.1} parent=1 // loop_footer_branch
      %25 = sbr.rel target = $region3
    $region8: #{tpu_custom_call.1} parent=1 // loop_exit
      _
    %1548 = vsyncpa [#allocation3], 1
    %s1549 = scalar_lea.sflag [#allocation3], 1
    %1550 = vsyncpa %s1549, 1
    %1551 = vsyncpa [#allocation6], 1
    %s1552 = scalar_lea.sflag [#allocation6], 1
    %1553 = vsyncpa %s1552, 1
    %1554 = vsyncpa [#allocation9], 1
    %1555 = vsyncpa [#allocation12], 1
    %1556 = vsyncpa [#allocation4], 1
    %s1557 = scalar_lea.sflag [#allocation4], 1
    %1558 = vsyncpa %s1557, 1

</llo_original>
